<compile_context>
chip_gen: v6e
topology: v6e:2x2x1
jax: 0.10.0
libtpu: 0.0.40
codegen_flags: <defaults>
</compile_context>

<pallas_src>
import functools

import jax
import jax.numpy as jnp
from jax.experimental import pallas as pl
from jax.experimental.pallas import tpu as pltpu

# Explicit VMEM budget (review: budget deliberately for v7x's 64 MiB physical
# VMEM).  Actual per-call use here is < 1 MiB; 32 MiB leaves ample headroom on
# every generation.
_VMEM_LIMIT_BYTES = 32 * 1024 * 1024


def _pick_tm(m):
    """M-tile: keep the whole M in one block at small (overhead-bound) sizes;
    split into >=2 tiles once M is large enough that megacore / pipelining pays
    (full-array block dims waive the (8,128) divisibility constraint)."""
    for tm in (512, 256, 128):
        if m >= 2 * tm and m % tm == 0:
            return tm
    return m


# -----------------------------------------------------------------------------
# Fused matmul + bias + optional ReLU.
# Single K step (whole reduction in one tile), weight/bias VMEM-resident,
# direct-write epilogue.
# -----------------------------------------------------------------------------
def _make_matmul_kernel(apply_relu):
    def kernel(x_ref, w_ref, b_ref, o_ref):
        y = jnp.dot(x_ref[...], w_ref[...], preferred_element_type=jnp.float32)
        y = y + b_ref[...]
        if apply_relu:
            y = jnp.maximum(y, 0.0)
        o_ref[...] = y.astype(o_ref.dtype)
    return kernel


def matmul_bias_act(x, w, b, *, relu, out_dtype):
    """maybe_relu(x @ w + b).  x: (M, K) activations, w: (K, N) packed weight
    (bf16 or f32), b: (1, N) f32 bias."""
    m, k = x.shape
    kw, n = w.shape
    assert kw == k, (kw, k)
    tm = _pick_tm(m)
    grid = (m // tm,)

    cost = pl.CostEstimate(
        flops=2 * m * k * n,
        transcendentals=0,
        # x / w / b are each DMA'd exactly once (w, b resident; single K step).
        bytes_accessed=(m * k * x.dtype.itemsize + k * n * w.dtype.itemsize
                        + n * 4 + m * n * jnp.dtype(out_dtype).itemsize),
    )

    return pl.pallas_call(
        _make_matmul_kernel(relu),
        out_shape=jax.ShapeDtypeStruct((m, n), out_dtype),
        grid_spec=pltpu.PrefetchScalarGridSpec(
            num_scalar_prefetch=0,
            grid=grid,
            in_specs=[
                pl.BlockSpec((tm, k), lambda i: (i, 0)),   # activations (M-tiled)
                pl.BlockSpec((k, n), lambda i: (0, 0)),    # weight: VMEM-resident
                pl.BlockSpec((1, n), lambda i: (0, 0)),    # bias:   VMEM-resident
            ],
            out_specs=pl.BlockSpec((tm, n), lambda i: (i, 0)),
        ),
        compiler_params=pltpu.CompilerParams(
            dimension_semantics=("parallel",),
            vmem_limit_bytes=_VMEM_LIMIT_BYTES),
        cost_estimate=cost,
    )(x, w, b)


# -----------------------------------------------------------------------------
# Fused linear tail: flatten -> [Linear + ReLU]* -> Linear in ONE pallas_call,
# all weight matrices VMEM-resident, ReLUs between the dots inside the kernel.
# -----------------------------------------------------------------------------
def _make_tail_kernel(n_layers):
    def kernel(*refs):
        x_ref, o_ref = refs[0], refs[-1]
        h = x_ref[...]
        for li in range(n_layers):
            w_ref, b_ref = refs[1 + 2 * li], refs[2 + 2 * li]
            y = jnp.dot(h, w_ref[...], preferred_element_type=jnp.float32)
            y = y + b_ref[...]
            if li < n_layers - 1:
                h = jnp.maximum(y, 0.0).astype(x_ref.dtype)
            else:
                h = y
        o_ref[...] = h.astype(o_ref.dtype)
    return kernel


def linear_tail(x, weights, biases, *, out_dtype):
    m, k = x.shape
    n_layers = len(weights)
    n_out = weights[-1].shape[1]
    tm = _pick_tm(m)
    grid = (m // tm,)

    in_specs = [pl.BlockSpec((tm, k), lambda i: (i, 0))]
    operands = [x]
    flops = 0
    bytes_accessed = (m * k * x.dtype.itemsize
                      + m * n_out * jnp.dtype(out_dtype).itemsize)
    for w, b in zip(weights, biases):
        in_specs.append(pl.BlockSpec(w.shape, lambda i: (0, 0)))   # resident
        in_specs.append(pl.BlockSpec(b.shape, lambda i: (0, 0)))   # resident
        operands += [w, b]
        flops += 2 * m * w.shape[0] * w.shape[1]
        bytes_accessed += w.size * w.dtype.itemsize + b.size * 4

    return pl.pallas_call(
        _make_tail_kernel(n_layers),
        out_shape=jax.ShapeDtypeStruct((m, n_out), out_dtype),
        grid_spec=pltpu.PrefetchScalarGridSpec(
            num_scalar_prefetch=0,
            grid=grid,
            in_specs=in_specs,
            out_specs=pl.BlockSpec((tm, n_out), lambda i: (i, 0)),
        ),
        compiler_params=pltpu.CompilerParams(
            dimension_semantics=("parallel",),
            vmem_limit_bytes=_VMEM_LIMIT_BYTES),
        cost_estimate=pl.CostEstimate(flops=flops, transcendentals=0,
                                      bytes_accessed=bytes_accessed),
    )(*operands)


# -----------------------------------------------------------------------------
# Parameter init: pack weights ONCE into matmul-ready (K, N) tensors (bf16 for
# the production path, f32 for the strict-ordering check).  No padding anywhere.
# Shapes mirror the PyTorch CNNBackbone __init__.
# -----------------------------------------------------------------------------
def init_params(key, obs_shape, output_dim, channels, kernel_sizes, strides,
                hidden_dims):
    hidden_dims = tuple(hidden_dims) if hidden_dims else ()
    c_in, h, w = obs_shape
    ki = iter(jax.random.split(key, 2 * (len(channels) + len(hidden_dims) + 1)))

    convs = []
    for c_out, k, s in zip(channels, kernel_sizes, strides):
        kw_key, kb_key = next(ki), next(ki)
        fan_in = c_in * k * k
        w_raw = jax.random.normal(kw_key, (c_out, c_in, k, k),
                                  jnp.float32) / jnp.sqrt(fan_in)
        b_raw = 0.01 * jax.random.normal(kb_key, (c_out,), jnp.float32)
        # K ordering = (c_in, kh, kw) channel-major, matching
        # lax.conv_general_dilated_patches' output-feature ordering.
        w_mat = w_raw.reshape(c_out, fan_in).T            # (K, c_out)
        convs.append(dict(
            w_hi=w_mat, w_lo=w_mat.astype(jnp.bfloat16),
            b=b_raw.reshape(1, -1), k=k, s=s, c_out=c_out,
            w_raw=w_raw, b_raw=b_raw))
        c_in = c_out
        h = (h - k) // s + 1
        w = (w - k) // s + 1

    linears = []
    if hidden_dims:
        n_flatten = c_in * h * w
        dims = [n_flatten] + list(hidden_dims) + [output_dim]
        for li in range(len(dims) - 1):
            d_in, d_out = dims[li], dims[li + 1]
            kw_key, kb_key = next(ki), next(ki)
            w_raw = jax.random.normal(kw_key, (d_out, d_in),
                                      jnp.float32) / jnp.sqrt(d_in)
            b_raw = 0.01 * jax.random.normal(kb_key, (d_out,), jnp.float32)
            if li == 0:
                # Fold the PyTorch (C,H,W) flatten permutation into the first
                # Linear's columns so the forward flattens NHWC directly.
                w_mat = (w_raw.reshape(d_out, c_in, h, w)
                         .transpose(0, 2, 3, 1).reshape(d_out, d_in).T)
            else:
                w_mat = w_raw.T
            linears.append(dict(
                w_hi=w_mat, w_lo=w_mat.astype(jnp.bfloat16),
                b=b_raw.reshape(1, -1), w_raw=w_raw, b_raw=b_raw))
    return dict(convs=convs, linears=linears)


# -----------------------------------------------------------------------------
# Forward pass (mirrors CNNBackbone.forward)
# -----------------------------------------------------------------------------
def cnn_backbone_forward(params, x_nchw, *, compute_dtype=jnp.bfloat16):
    wkey = "w_lo" if compute_dtype == jnp.bfloat16 else "w_hi"
    # Single layout conversion at the module boundary; compute-dtype activations
    # (bf16 on the production path) end to end.
    x = jnp.transpose(x_nchw, (0, 2, 3, 1)).astype(compute_dtype)   # NHWC

    for cv in params["convs"]:
        n = x.shape[0]
        k, s = cv["k"], cv["s"]
        # TODO(synk): move im2col into the Pallas kernel (shifted pl.ds loads over
        # (Ho, Wo)) to avoid materializing the kh*kw-times patch blowup in HBM.
        patches = jax.lax.conv_general_dilated_patches(
            x, (k, k), (s, s), "VALID",
            dimension_numbers=("NHWC", "HWIO", "NHWC"))
        _, ho, wo, kdim = patches.shape
        y = matmul_bias_act(patches.reshape(n * ho * wo, kdim),
                            cv[wkey], cv["b"], relu=True, out_dtype=compute_dtype)
        x = y.reshape(n, ho, wo, cv["c_out"])

    x = x.reshape(x.shape[0], -1)   # NHWC flatten (fold handled at init)
    if not params["linears"]:
        return x.astype(jnp.float32)
    return linear_tail(x,
                       [ln[wkey] for ln in params["linears"]],
                       [ln["b"] for ln in params["linears"]],
                       out_dtype=jnp.float32)


# -----------------------------------------------------------------------------
# Pure-XLA f32 reference (numerical self-check)
# -----------------------------------------------------------------------------
def reference_forward(params, x_nchw):
    x = x_nchw.astype(jnp.float32)
    for cv in params["convs"]:
        x = jax.lax.conv_general_dilated(
            x, cv["w_raw"], (cv["s"], cv["s"]), "VALID",
            dimension_numbers=("NCHW", "OIHW", "NCHW"),
            precision=jax.lax.Precision.HIGHEST)
        x = jnp.maximum(x + cv["b_raw"].reshape(1, -1, 1, 1), 0.0)
    x = x.reshape(x.shape[0], -1)
    n_lin = len(params["linears"])
    for li, ln in enumerate(params["linears"]):
        x = jnp.dot(x, ln["w_raw"].T,
                    precision=jax.lax.Precision.HIGHEST) + ln["b_raw"]
        if li < n_lin - 1:
            x = jnp.maximum(x, 0.0)
    return x


if __name__ == "__main__":
    key = jax.random.PRNGKey(0)
    kp, kx = jax.random.split(key)

    # Small shapes consistent with the module defaults:
    # conv stack k/s = (8,4),(4,2),(3,1): 44 -> 10 -> 4 -> 2, n_flatten = 64*2*2.
    obs_shape = (3, 44, 44)
    batch = 2
    output_dim = 6
    channels = (32, 64, 64)
    kernel_sizes = (8, 4, 3)
    strides = (4, 2, 1)
    hidden_dims = (128,)

    params = init_params(kp, obs_shape, output_dim, channels, kernel_sizes,
                         strides, hidden_dims)
    x = jax.random.normal(kx, (batch,) + obs_shape, jnp.float32)

    # Production path: bf16 MXU inputs, f32 accumulation, f32 final output.
    fwd = jax.jit(functools.partial(cnn_backbone_forward, params))
    out = jax.block_until_ready(fwd(x))
    assert out.shape == (batch, output_dim), out.shape

    ref = jax.block_until_ready(reference_forward(params, x))
    scale = float(jnp.max(jnp.abs(ref))) + 1e-6

    # Strict ordering/layout validation: same Pallas kernels, f32 throughout.
    fwd_f32 = jax.jit(functools.partial(cnn_backbone_forward, params,
                                        compute_dtype=jnp.float32))
    out_f32 = jax.block_until_ready(fwd_f32(x))
    err_f32 = float(jnp.max(jnp.abs(out_f32 - ref))) / scale
    assert err_f32 < 1e-2, f"f32 Pallas path mismatch vs XLA reference: {err_f32}"

    # bf16 production path (expected precision deviation from the f32 reference).
    err_bf16 = float(jnp.max(jnp.abs(out - ref))) / scale
    assert err_bf16 < 4e-2, f"bf16 Pallas path mismatch vs XLA reference: {err_bf16}"

    print("KERNEL_OK")
</pallas_src>

<mosaic_0001>
module attributes {stable_mosaic.version = 11 : i64} {
  func.func @kernel(%arg0: i32, %arg1: memref<200x192xbf16, #tpu.memory_space<vmem>>, %arg2: memref<192x32xbf16, #tpu.memory_space<vmem>>, %arg3: memref<1x32xf32, #tpu.memory_space<vmem>>, %arg4: memref<200x32xbf16, #tpu.memory_space<vmem>>) attributes {dimension_semantics = [#tpu.dimension_semantics<parallel>], iteration_bounds = array<i64: 1>, scalar_prefetch = 0 : i64, scratch_operands = 0 : i64, tpu.core_type = #tpu.core_type<tc>, window_params = [{transform_indices = @transform_0, window_bounds = array<i64: 200, 192>}, {pipeline_mode = #tpu.pipeline_mode<synchronous>, transform_indices = @transform_1, window_bounds = array<i64: 192, 32>}, {pipeline_mode = #tpu.pipeline_mode<synchronous>, transform_indices = @transform_2, window_bounds = array<i64: 1, 32>}, {transform_indices = @transform_3, window_bounds = array<i64: 200, 32>}]} {
    %c0 = arith.constant 0 : index
    %c0_0 = arith.constant 0 : index
    %0 = vector.load %arg1[%c0, %c0_0] : memref<200x192xbf16, #tpu.memory_space<vmem>>, vector<200x192xbf16>
    %c0_1 = arith.constant 0 : index
    %c0_2 = arith.constant 0 : index
    %1 = vector.load %arg2[%c0_1, %c0_2] : memref<192x32xbf16, #tpu.memory_space<vmem>>, vector<192x32xbf16>
    %cst = arith.constant dense<0.000000e+00> : vector<200x32xf32>
    %2 = tpu.matmul %0, %1, %cst {dimension_numbers = #tpu.dot_dimension_numbers<[1], [0], [0], [1], [0, 0, 1, 1], [], []>} : vector<200x192xbf16>, vector<192x32xbf16>, vector<200x32xf32> -> vector<200x32xf32>
    %c0_3 = arith.constant 0 : index
    %c0_4 = arith.constant 0 : index
    %3 = vector.load %arg3[%c0_3, %c0_4] : memref<1x32xf32, #tpu.memory_space<vmem>>, vector<1x32xf32>
    %4 = vector.broadcast %3 : vector<1x32xf32> to vector<200x32xf32>
    %5 = arith.addf %2, %4 : vector<200x32xf32>
    %cst_5 = arith.constant 0.000000e+00 : f32
    %6 = vector.broadcast %cst_5 : f32 to vector<200x32xf32>
    %7 = arith.maximumf %5, %6 : vector<200x32xf32>
    %8 = arith.truncf %7 : vector<200x32xf32> to vector<200x32xbf16>
    %c0_6 = arith.constant 0 : index
    %c0_7 = arith.constant 0 : index
    %9 = vector.load %arg4[%c0_6, %c0_7] : memref<200x32xbf16, #tpu.memory_space<vmem>>, vector<200x32xbf16>
    tpu.vector_store %arg4[%c0_6, %c0_7], %8 {strides = array<i32>} : memref<200x32xbf16, #tpu.memory_space<vmem>>, vector<200x32xbf16>,
    return
  }
  func.func @transform_0(%arg0: i32) -> (i32, i32) {
    %c0_i32 = arith.constant 0 : i32
    %c0_i32_0 = arith.constant 0 : i32
    return %arg0, %c0_i32 : i32, i32
  }
  func.func @transform_1(%arg0: i32) -> (i32, i32) {
    %c0_i32 = arith.constant 0 : i32
    %c0_i32_0 = arith.constant 0 : i32
    %c0_i32_1 = arith.constant 0 : i32
    return %c0_i32, %c0_i32_0 : i32, i32
  }
  func.func @transform_2(%arg0: i32) -> (i32, i32) {
    %c0_i32 = arith.constant 0 : i32
    %c0_i32_0 = arith.constant 0 : i32
    %c0_i32_1 = arith.constant 0 : i32
    return %c0_i32, %c0_i32_0 : i32, i32
  }
  func.func @transform_3(%arg0: i32) -> (i32, i32) {
    %c0_i32 = arith.constant 0 : i32
    %c0_i32_0 = arith.constant 0 : i32
    return %arg0, %c0_i32 : i32, i32
  }
}

module attributes {stable_mosaic.version = 11 : i64} {
  func.func @kernel(%arg0: i32, %arg1: memref<32x512xbf16, #tpu.memory_space<vmem>>, %arg2: memref<512x64xbf16, #tpu.memory_space<vmem>>, %arg3: memref<1x64xf32, #tpu.memory_space<vmem>>, %arg4: memref<32x64xbf16, #tpu.memory_space<vmem>>) attributes {dimension_semantics = [#tpu.dimension_semantics<parallel>], iteration_bounds = array<i64: 1>, scalar_prefetch = 0 : i64, scratch_operands = 0 : i64, tpu.core_type = #tpu.core_type<tc>, window_params = [{transform_indices = @transform_0, window_bounds = array<i64: 32, 512>}, {pipeline_mode = #tpu.pipeline_mode<synchronous>, transform_indices = @transform_1, window_bounds = array<i64: 512, 64>}, {pipeline_mode = #tpu.pipeline_mode<synchronous>, transform_indices = @transform_2, window_bounds = array<i64: 1, 64>}, {transform_indices = @transform_3, window_bounds = array<i64: 32, 64>}]} {
    %c0 = arith.constant 0 : index
    %c0_0 = arith.constant 0 : index
    %0 = vector.load %arg1[%c0, %c0_0] : memref<32x512xbf16, #tpu.memory_space<vmem>>, vector<32x512xbf16>
    %c0_1 = arith.constant 0 : index
    %c0_2 = arith.constant 0 : index
    %1 = vector.load %arg2[%c0_1, %c0_2] : memref<512x64xbf16, #tpu.memory_space<vmem>>, vector<512x64xbf16>
    %cst = arith.constant dense<0.000000e+00> : vector<32x64xf32>
    %2 = tpu.matmul %0, %1, %cst {dimension_numbers = #tpu.dot_dimension_numbers<[1], [0], [0], [1], [0, 0, 1, 1], [], []>} : vector<32x512xbf16>, vector<512x64xbf16>, vector<32x64xf32> -> vector<32x64xf32>
    %c0_3 = arith.constant 0 : index
    %c0_4 = arith.constant 0 : index
    %3 = vector.load %arg3[%c0_3, %c0_4] : memref<1x64xf32, #tpu.memory_space<vmem>>, vector<1x64xf32>
    %4 = vector.broadcast %3 : vector<1x64xf32> to vector<32x64xf32>
    %5 = arith.addf %2, %4 : vector<32x64xf32>
    %cst_5 = arith.constant 0.000000e+00 : f32
    %6 = vector.broadcast %cst_5 : f32 to vector<32x64xf32>
    %7 = arith.maximumf %5, %6 : vector<32x64xf32>
    %8 = arith.truncf %7 : vector<32x64xf32> to vector<32x64xbf16>
    %c0_6 = arith.constant 0 : index
    %c0_7 = arith.constant 0 : index
    %9 = vector.load %arg4[%c0_6, %c0_7] : memref<32x64xbf16, #tpu.memory_space<vmem>>, vector<32x64xbf16>
    tpu.vector_store %arg4[%c0_6, %c0_7], %8 {strides = array<i32>} : memref<32x64xbf16, #tpu.memory_space<vmem>>, vector<32x64xbf16>,
    return
  }
  func.func @transform_0(%arg0: i32) -> (i32, i32) {
    %c0_i32 = arith.constant 0 : i32
    %c0_i32_0 = arith.constant 0 : i32
    return %arg0, %c0_i32 : i32, i32
  }
  func.func @transform_1(%arg0: i32) -> (i32, i32) {
    %c0_i32 = arith.constant 0 : i32
    %c0_i32_0 = arith.constant 0 : i32
    %c0_i32_1 = arith.constant 0 : i32
    return %c0_i32, %c0_i32_0 : i32, i32
  }
  func.func @transform_2(%arg0: i32) -> (i32, i32) {
    %c0_i32 = arith.constant 0 : i32
    %c0_i32_0 = arith.constant 0 : i32
    %c0_i32_1 = arith.constant 0 : i32
    return %c0_i32, %c0_i32_0 : i32, i32
  }
  func.func @transform_3(%arg0: i32) -> (i32, i32) {
    %c0_i32 = arith.constant 0 : i32
    %c0_i32_0 = arith.constant 0 : i32
    return %arg0, %c0_i32 : i32, i32
  }
}

module attributes {stable_mosaic.version = 11 : i64} {
  func.func @kernel(%arg0: i32, %arg1: memref<8x576xbf16, #tpu.memory_space<vmem>>, %arg2: memref<576x64xbf16, #tpu.memory_space<vmem>>, %arg3: memref<1x64xf32, #tpu.memory_space<vmem>>, %arg4: memref<8x64xbf16, #tpu.memory_space<vmem>>) attributes {dimension_semantics = [#tpu.dimension_semantics<parallel>], iteration_bounds = array<i64: 1>, scalar_prefetch = 0 : i64, scratch_operands = 0 : i64, tpu.core_type = #tpu.core_type<tc>, window_params = [{transform_indices = @transform_0, window_bounds = array<i64: 8, 576>}, {pipeline_mode = #tpu.pipeline_mode<synchronous>, transform_indices = @transform_1, window_bounds = array<i64: 576, 64>}, {pipeline_mode = #tpu.pipeline_mode<synchronous>, transform_indices = @transform_2, window_bounds = array<i64: 1, 64>}, {transform_indices = @transform_3, window_bounds = array<i64: 8, 64>}]} {
    %c0 = arith.constant 0 : index
    %c0_0 = arith.constant 0 : index
    %0 = vector.load %arg1[%c0, %c0_0] : memref<8x576xbf16, #tpu.memory_space<vmem>>, vector<8x576xbf16>
    %c0_1 = arith.constant 0 : index
    %c0_2 = arith.constant 0 : index
    %1 = vector.load %arg2[%c0_1, %c0_2] : memref<576x64xbf16, #tpu.memory_space<vmem>>, vector<576x64xbf16>
    %cst = arith.constant dense<0.000000e+00> : vector<8x64xf32>
    %2 = tpu.matmul %0, %1, %cst {dimension_numbers = #tpu.dot_dimension_numbers<[1], [0], [0], [1], [0, 0, 1, 1], [], []>} : vector<8x576xbf16>, vector<576x64xbf16>, vector<8x64xf32> -> vector<8x64xf32>
    %c0_3 = arith.constant 0 : index
    %c0_4 = arith.constant 0 : index
    %3 = vector.load %arg3[%c0_3, %c0_4] : memref<1x64xf32, #tpu.memory_space<vmem>>, vector<1x64xf32>
    %4 = vector.broadcast %3 : vector<1x64xf32> to vector<8x64xf32>
    %5 = arith.addf %2, %4 : vector<8x64xf32>
    %cst_5 = arith.constant 0.000000e+00 : f32
    %6 = vector.broadcast %cst_5 : f32 to vector<8x64xf32>
    %7 = arith.maximumf %5, %6 : vector<8x64xf32>
    %8 = arith.truncf %7 : vector<8x64xf32> to vector<8x64xbf16>
    %c0_6 = arith.constant 0 : index
    %c0_7 = arith.constant 0 : index
    %9 = vector.load %arg4[%c0_6, %c0_7] : memref<8x64xbf16, #tpu.memory_space<vmem>>, vector<8x64xbf16>
    tpu.vector_store %arg4[%c0_6, %c0_7], %8 {strides = array<i32>} : memref<8x64xbf16, #tpu.memory_space<vmem>>, vector<8x64xbf16>,
    return
  }
  func.func @transform_0(%arg0: i32) -> (i32, i32) {
    %c0_i32 = arith.constant 0 : i32
    %c0_i32_0 = arith.constant 0 : i32
    return %arg0, %c0_i32 : i32, i32
  }
  func.func @transform_1(%arg0: i32) -> (i32, i32) {
    %c0_i32 = arith.constant 0 : i32
    %c0_i32_0 = arith.constant 0 : i32
    %c0_i32_1 = arith.constant 0 : i32
    return %c0_i32, %c0_i32_0 : i32, i32
  }
  func.func @transform_2(%arg0: i32) -> (i32, i32) {
    %c0_i32 = arith.constant 0 : i32
    %c0_i32_0 = arith.constant 0 : i32
    %c0_i32_1 = arith.constant 0 : i32
    return %c0_i32, %c0_i32_0 : i32, i32
  }
  func.func @transform_3(%arg0: i32) -> (i32, i32) {
    %c0_i32 = arith.constant 0 : i32
    %c0_i32_0 = arith.constant 0 : i32
    return %arg0, %c0_i32 : i32, i32
  }
}

module attributes {stable_mosaic.version = 11 : i64} {
  func.func @kernel(%arg0: i32, %arg1: memref<2x256xbf16, #tpu.memory_space<vmem>>, %arg2: memref<256x128xbf16, #tpu.memory_space<vmem>>, %arg3: memref<1x128xf32, #tpu.memory_space<vmem>>, %arg4: memref<128x6xbf16, #tpu.memory_space<vmem>>, %arg5: memref<1x6xf32, #tpu.memory_space<vmem>>, %arg6: memref<2x6xf32, #tpu.memory_space<vmem>>) attributes {dimension_semantics = [#tpu.dimension_semantics<parallel>], iteration_bounds = array<i64: 1>, scalar_prefetch = 0 : i64, scratch_operands = 0 : i64, tpu.core_type = #tpu.core_type<tc>, window_params = [{transform_indices = @transform_0, window_bounds = array<i64: 2, 256>}, {pipeline_mode = #tpu.pipeline_mode<synchronous>, transform_indices = @transform_1, window_bounds = array<i64: 256, 128>}, {pipeline_mode = #tpu.pipeline_mode<synchronous>, transform_indices = @transform_2, window_bounds = array<i64: 1, 128>}, {pipeline_mode = #tpu.pipeline_mode<synchronous>, transform_indices = @transform_3, window_bounds = array<i64: 128, 6>}, {pipeline_mode = #tpu.pipeline_mode<synchronous>, transform_indices = @transform_4, window_bounds = array<i64: 1, 6>}, {transform_indices = @transform_5, window_bounds = array<i64: 2, 6>}]} {
    %c0 = arith.constant 0 : index
    %c0_0 = arith.constant 0 : index
    %0 = vector.load %arg1[%c0, %c0_0] : memref<2x256xbf16, #tpu.memory_space<vmem>>, vector<2x256xbf16>
    %c0_1 = arith.constant 0 : index
    %c0_2 = arith.constant 0 : index
    %1 = vector.load %arg2[%c0_1, %c0_2] : memref<256x128xbf16, #tpu.memory_space<vmem>>, vector<256x128xbf16>
    %cst = arith.constant dense<0.000000e+00> : vector<2x128xf32>
    %2 = tpu.matmul %0, %1, %cst {dimension_numbers = #tpu.dot_dimension_numbers<[1], [0], [0], [1], [0, 0, 1, 1], [], []>} : vector<2x256xbf16>, vector<256x128xbf16>, vector<2x128xf32> -> vector<2x128xf32>
    %c0_3 = arith.constant 0 : index
    %c0_4 = arith.constant 0 : index
    %3 = vector.load %arg3[%c0_3, %c0_4] : memref<1x128xf32, #tpu.memory_space<vmem>>, vector<1x128xf32>
    %4 = vector.broadcast %3 : vector<1x128xf32> to vector<2x128xf32>
    %5 = arith.addf %2, %4 : vector<2x128xf32>
    %cst_5 = arith.constant 0.000000e+00 : f32
    %6 = vector.broadcast %cst_5 : f32 to vector<2x128xf32>
    %7 = arith.maximumf %5, %6 : vector<2x128xf32>
    %8 = arith.truncf %7 : vector<2x128xf32> to vector<2x128xbf16>
    %c0_6 = arith.constant 0 : index
    %c0_7 = arith.constant 0 : index
    %9 = vector.load %arg4[%c0_6, %c0_7] : memref<128x6xbf16, #tpu.memory_space<vmem>>, vector<128x6xbf16>
    %cst_8 = arith.constant dense<0.000000e+00> : vector<2x6xf32>
    %10 = tpu.matmul %8, %9, %cst_8 {dimension_numbers = #tpu.dot_dimension_numbers<[1], [0], [0], [1], [0, 0, 1, 1], [], []>} : vector<2x128xbf16>, vector<128x6xbf16>, vector<2x6xf32> -> vector<2x6xf32>
    %c0_9 = arith.constant 0 : index
    %c0_10 = arith.constant 0 : index
    %11 = vector.load %arg5[%c0_9, %c0_10] : memref<1x6xf32, #tpu.memory_space<vmem>>, vector<1x6xf32>
    %12 = vector.broadcast %11 : vector<1x6xf32> to vector<2x6xf32>
    %13 = arith.addf %10, %12 : vector<2x6xf32>
    %c0_11 = arith.constant 0 : index
    %c0_12 = arith.constant 0 : index
    %14 = vector.load %arg6[%c0_11, %c0_12] : memref<2x6xf32, #tpu.memory_space<vmem>>, vector<2x6xf32>
    tpu.vector_store %arg6[%c0_11, %c0_12], %13 {strides = array<i32>} : memref<2x6xf32, #tpu.memory_space<vmem>>, vector<2x6xf32>,
    return
  }
  func.func @transform_0(%arg0: i32) -> (i32, i32) {
    %c0_i32 = arith.constant 0 : i32
    %c0_i32_0 = arith.constant 0 : i32
    return %arg0, %c0_i32 : i32, i32
  }
  func.func @transform_1(%arg0: i32) -> (i32, i32) {
    %c0_i32 = arith.constant 0 : i32
    %c0_i32_0 = arith.constant 0 : i32
    %c0_i32_1 = arith.constant 0 : i32
    return %c0_i32, %c0_i32_0 : i32, i32
  }
  func.func @transform_2(%arg0: i32) -> (i32, i32) {
    %c0_i32 = arith.constant 0 : i32
    %c0_i32_0 = arith.constant 0 : i32
    %c0_i32_1 = arith.constant 0 : i32
    return %c0_i32, %c0_i32_0 : i32, i32
  }
  func.func @transform_3(%arg0: i32) -> (i32, i32) {
    %c0_i32 = arith.constant 0 : i32
    %c0_i32_0 = arith.constant 0 : i32
    %c0_i32_1 = arith.constant 0 : i32
    return %c0_i32, %c0_i32_0 : i32, i32
  }
  func.func @transform_4(%arg0: i32) -> (i32, i32) {
    %c0_i32 = arith.constant 0 : i32
    %c0_i32_0 = arith.constant 0 : i32
    %c0_i32_1 = arith.constant 0 : i32
    return %c0_i32, %c0_i32_0 : i32, i32
  }
  func.func @transform_5(%arg0: i32) -> (i32, i32) {
    %c0_i32 = arith.constant 0 : i32
    %c0_i32_0 = arith.constant 0 : i32
    return %arg0, %c0_i32 : i32, i32
  }
}

</mosaic_0001>

<llo_original>
// kernel: cnn_backbone_forward.4
$region0: #{cnn_backbone_forward.4}
  #allocation0 [shape = 'u32[]', space=smem, size = 0x4, offset = 0x4, fixed_abs, tag = 'smem constant byte address 0x4 - core index']
  #allocation1 [shape = 'u32[144,128]{1,0:T(1,128)}', space=vmem, size = 0x12000, scoped, tag = 'internal scratch']
  %s0 = inlined_call_operand.vmem [shape: bf16[200,192], index: 0, kind: input, shape index: {}]
  %s1 = inlined_call_operand.vmem [shape: bf16[192,32], index: 1, kind: input, shape index: {}]
  %s2 = inlined_call_operand.vmem [shape: f32[1,32], index: 2, kind: input, shape index: {}]
  %s3 = inlined_call_operand.vmem [shape: bf16[200,32], index: 3, kind: output, shape index: {}]
  %s4 = sld [smem:[#allocation0]]
  $region22: #{cnn_backbone_forward.4} parent=0
    _
  %s6 = ssub.s32 1, %s4
  %s7 = scalar_select 0, %s6, %s4
  // Predicated region
  $region2: #{cnn_backbone_forward.4} parent=0 // pred_check
    _
  $region3: #{cnn_backbone_forward.4} parent=0 // pred_check_branch
    %9 = sbr.rel (0) target = $region5
  $region4: #{cnn_backbone_forward.4} parent=0 // pred_region
    _
  $region5: #{cnn_backbone_forward.4} parent=0 // pred_fallthru
    _
  // Predicated region
  $region6: #{cnn_backbone_forward.4} parent=0 // pred_check
    _
  $region7: #{cnn_backbone_forward.4} parent=0 // pred_check_branch
    %11 = sbr.rel (0) target = $region9
  $region8: #{cnn_backbone_forward.4} parent=0 // pred_region
    _
  $region9: #{cnn_backbone_forward.4} parent=0 // pred_fallthru
    _
  // Predicated region
  $region10: #{cnn_backbone_forward.4} parent=0 // pred_check
    _
  $region11: #{cnn_backbone_forward.4} parent=0 // pred_check_branch
    %13 = sbr.rel (0) target = $region13
  $region12: #{cnn_backbone_forward.4} parent=0 // pred_region
    _
  $region13: #{cnn_backbone_forward.4} parent=0 // pred_fallthru
    _
  %v15 = vld [vmem:[%s0] sm:$0xff]
  %v16 = vld [vmem:[%s0 + $0x8] sm:$0xff]
  %v17 = vld [vmem:[%s0 + $0x10] sm:$0xff]
  %v18 = vld [vmem:[%s0 + $0x18] sm:$0xff]
  %v19 = vld [vmem:[%s0 + $0x20] sm:$0xff]
  %v20 = vld [vmem:[%s0 + $0x28] sm:$0xff]
  %v21 = vld [vmem:[%s0 + $0x30] sm:$0xff]
  %v22 = vld [vmem:[%s0 + $0x38] sm:$0xff]
  %v23 = vld [vmem:[%s0 + $0x40] sm:$0xff]
  %v24 = vld [vmem:[%s0 + $0x48] sm:$0xff]
  %v25 = vld [vmem:[%s0 + $0x50] sm:$0xff]
  %v26 = vld [vmem:[%s0 + $0x58] sm:$0xff]
  %v27 = vld [vmem:[%s0 + $0x60] sm:$0xff]
  %v28 = vld [vmem:[%s0 + $0x68] sm:$0xff]
  %v29 = vld [vmem:[%s0 + $0x70] sm:$0xff]
  %v30 = vld [vmem:[%s0 + $0x78] sm:$0xff]
  %v31 = vld [vmem:[%s0 + $0x80] sm:$0xff]
  %v32 = vld [vmem:[%s0 + $0x88] sm:$0xff]
  %v33 = vld [vmem:[%s0 + $0x90] sm:$0xff]
  %v34 = vld [vmem:[%s0 + $0x98] sm:$0xff]
  %v35 = vld [vmem:[%s0 + $0xa0] sm:$0xff]
  %v36 = vld [vmem:[%s0 + $0xa8] sm:$0xff]
  %v37 = vld [vmem:[%s0 + $0xb0] sm:$0xff]
  %v38 = vld [vmem:[%s0 + $0xb8] sm:$0xff]
  %v39 = vld [vmem:[%s0 + $0xc0] sm:$0xff]
  %v40 = vld [vmem:[%s1] sm:$0xf]
  %v41 = vld [vmem:[%s1 + $0x4] sm:$0xf]
  %v42 = vld [vmem:[%s1 + $0x8] sm:$0xf]
  %v43 = vld [vmem:[%s1 + $0xc] sm:$0xf]
  %v44 = vld [vmem:[%s1 + $0x10] sm:$0xf]
  %v45 = vld [vmem:[%s1 + $0x14] sm:$0xf]
  %v46 = vld [vmem:[%s1 + $0x18] sm:$0xf]
  %v47 = vld [vmem:[%s1 + $0x1c] sm:$0xf]
  %v48 = vld [vmem:[%s1 + $0x20] sm:$0xf]
  %v49 = vld [vmem:[%s1 + $0x24] sm:$0xf]
  %v50 = vld [vmem:[%s1 + $0x28] sm:$0xf]
  %v51 = vld [vmem:[%s1 + $0x2c] sm:$0xf]
  %v52 = vld [vmem:[%s1 + $0x30] sm:$0xf]
  %v53 = vld [vmem:[%s1 + $0x34] sm:$0xf]
  %v54 = vld [vmem:[%s1 + $0x38] sm:$0xf]
  %v55 = vld [vmem:[%s1 + $0x3c] sm:$0xf]
  %v56 = vld [vmem:[%s1 + $0x40] sm:$0xf]
  %v57 = vld [vmem:[%s1 + $0x44] sm:$0xf]
  %v58 = vld [vmem:[%s1 + $0x48] sm:$0xf]
  %v59 = vld [vmem:[%s1 + $0x4c] sm:$0xf]
  %v60 = vld [vmem:[%s1 + $0x50] sm:$0xf]
  %v61 = vld [vmem:[%s1 + $0x54] sm:$0xf]
  %v62 = vld [vmem:[%s1 + $0x58] sm:$0xf]
  %v63 = vld [vmem:[%s1 + $0x5c] sm:$0xf]
  %v64 = vld [vmem:[%s2] sm:$0x1]
  %v66 = vlaneseq
  %v67 = vshrl.u32 %v66, 7
  %v68 = vsub.s32 0, %v67
  %v69 = vrot.slane %v64, %v68
  %v96 = vunpack.c.l.b16 %v15
  %v97 = vunpack.c.h.b16 %v15
  %v98 = vunpack.c.l.b16 %v16
  %v99 = vunpack.c.h.b16 %v16
  %v100 = vunpack.c.l.b16 %v17
  %v101 = vunpack.c.h.b16 %v17
  %v102 = vunpack.c.l.b16 %v18
  %v103 = vunpack.c.h.b16 %v18
  %v104 = vunpack.c.l.b16 %v19
  %v105 = vunpack.c.h.b16 %v19
  %v106 = vunpack.c.l.b16 %v20
  %v107 = vunpack.c.h.b16 %v20
  %v108 = vunpack.c.l.b16 %v21
  %v109 = vunpack.c.h.b16 %v21
  %v110 = vunpack.c.l.b16 %v22
  %v111 = vunpack.c.h.b16 %v22
  %v112 = vunpack.c.l.b16 %v23
  %v113 = vunpack.c.h.b16 %v23
  %v114 = vunpack.c.l.b16 %v24
  %v115 = vunpack.c.h.b16 %v24
  %v116 = vunpack.c.l.b16 %v25
  %v117 = vunpack.c.h.b16 %v25
  %v118 = vunpack.c.l.b16 %v26
  %v119 = vunpack.c.h.b16 %v26
  %v120 = vunpack.c.l.b16 %v27
  %v121 = vunpack.c.h.b16 %v27
  %v122 = vunpack.c.l.b16 %v28
  %v123 = vunpack.c.h.b16 %v28
  %v124 = vunpack.c.l.b16 %v29
  %v125 = vunpack.c.h.b16 %v29
  %v126 = vunpack.c.l.b16 %v30
  %v127 = vunpack.c.h.b16 %v30
  %v128 = vunpack.c.l.b16 %v31
  %v129 = vunpack.c.h.b16 %v31
  %v130 = vunpack.c.l.b16 %v32
  %v131 = vunpack.c.h.b16 %v32
  %v132 = vunpack.c.l.b16 %v33
  %v133 = vunpack.c.h.b16 %v33
  %v134 = vunpack.c.l.b16 %v34
  %v135 = vunpack.c.h.b16 %v34
  %v136 = vunpack.c.l.b16 %v35
  %v137 = vunpack.c.h.b16 %v35
  %v138 = vunpack.c.l.b16 %v36
  %v139 = vunpack.c.h.b16 %v36
  %v140 = vunpack.c.l.b16 %v37
  %v141 = vunpack.c.h.b16 %v37
  %v142 = vunpack.c.l.b16 %v38
  %v143 = vunpack.c.h.b16 %v38
  %v144 = vunpack.c.l.b16 %v39
  %v145 = vunpack.c.h.b16 %v39
  %v146 = vpack.c.b16 %v98, %v96
  %v147 = vpack.c.b16 %v99, %v97
  %v148 = vpack.c.b16 %v102, %v100
  %v149 = vpack.c.b16 %v103, %v101
  %v150 = vpack.c.b16 %v106, %v104
  %v151 = vpack.c.b16 %v107, %v105
  %v152 = vpack.c.b16 %v110, %v108
  %v153 = vpack.c.b16 %v111, %v109
  %v154 = vpack.c.b16 %v114, %v112
  %v155 = vpack.c.b16 %v115, %v113
  %v156 = vpack.c.b16 %v118, %v116
  %v157 = vpack.c.b16 %v119, %v117
  %v158 = vpack.c.b16 %v122, %v120
  %v159 = vpack.c.b16 %v123, %v121
  %v160 = vpack.c.b16 %v126, %v124
  %v161 = vpack.c.b16 %v127, %v125
  %v162 = vpack.c.b16 %v130, %v128
  %v163 = vpack.c.b16 %v131, %v129
  %v164 = vpack.c.b16 %v134, %v132
  %v165 = vpack.c.b16 %v135, %v133
  %v166 = vpack.c.b16 %v138, %v136
  %v167 = vpack.c.b16 %v139, %v137
  %v168 = vpack.c.b16 %v142, %v140
  %v169 = vpack.c.b16 %v143, %v141
  %v170 = vpack.c.b16 %v144, %v144
  %v171 = vpack.c.b16 %v145, %v145
  %v209 = vunpack.c.l.b16 %v40
  %v210 = vunpack.c.l.b16 %v41
  %v211 = vunpack.c.l.b16 %v42
  %v212 = vunpack.c.l.b16 %v43
  %v213 = vunpack.c.l.b16 %v44
  %v214 = vunpack.c.l.b16 %v45
  %v215 = vunpack.c.l.b16 %v46
  %v216 = vunpack.c.l.b16 %v47
  %v217 = vunpack.c.l.b16 %v48
  %v218 = vunpack.c.l.b16 %v49
  %v219 = vunpack.c.l.b16 %v50
  %v220 = vunpack.c.l.b16 %v51
  %v221 = vunpack.c.l.b16 %v52
  %v222 = vunpack.c.l.b16 %v53
  %v223 = vunpack.c.l.b16 %v54
  %v224 = vunpack.c.l.b16 %v55
  %v225 = vunpack.c.l.b16 %v56
  %v226 = vunpack.c.l.b16 %v57
  %v227 = vunpack.c.l.b16 %v58
  %v228 = vunpack.c.l.b16 %v59
  %v229 = vunpack.c.l.b16 %v60
  %v230 = vunpack.c.l.b16 %v61
  %v231 = vunpack.c.l.b16 %v62
  %v232 = vunpack.c.l.b16 %v63
  %v233 = vpack.c.b16 %v210, %v209
  %v234 = vpack.c.b16 %v212, %v211
  %v235 = vpack.c.b16 %v214, %v213
  %v236 = vpack.c.b16 %v216, %v215
  %v237 = vpack.c.b16 %v218, %v217
  %v238 = vpack.c.b16 %v220, %v219
  %v239 = vpack.c.b16 %v222, %v221
  %v240 = vpack.c.b16 %v224, %v223
  %v241 = vpack.c.b16 %v226, %v225
  %v242 = vpack.c.b16 %v228, %v227
  %v243 = vpack.c.b16 %v230, %v229
  %v244 = vpack.c.b16 %v232, %v231
  %vm257 = vcmask 523264
  %v259 = vsel %vm257, %v147, 0
  %v262 = vsel %vm257, %v149, 0
  %v265 = vsel %vm257, %v151, 0
  %v268 = vsel %vm257, %v153, 0
  %v271 = vsel %vm257, %v155, 0
  %v274 = vsel %vm257, %v157, 0
  %v277 = vsel %vm257, %v159, 0
  %v280 = vsel %vm257, %v161, 0
  %v283 = vsel %vm257, %v163, 0
  %v286 = vsel %vm257, %v165, 0
  %v289 = vsel %vm257, %v167, 0
  %v292 = vsel %vm257, %v169, 0
  %v295 = vsel %vm257, %v171, 0
  %297 = vmatprep.subr.bf16.mxu0 0
  %298 = vmatpush1.bf16.msra.mxu0 %v240
  %299 = vmatprep.subr.bf16.mxu0 0
  %300 = vmatpush1.bf16.msra.mxu0 %v239
  %301 = vmatprep.subr.bf16.mxu0 0
  %302 = vmatpush1.bf16.msra.mxu0 %v238
  %303 = vmatprep.subr.bf16.mxu0 0
  %304 = vmatpush1.bf16.msra.mxu0 %v237
  %305 = vmatprep.subr.bf16.mxu0 0
  %306 = vmatpush1.bf16.msra.mxu0 %v236
  %307 = vmatprep.subr.bf16.mxu0 0
  %308 = vmatpush1.bf16.msra.mxu0 %v235
  %309 = vmatprep.subr.bf16.mxu0 0
  %310 = vmatpush1.bf16.msra.mxu0 %v234
  %311 = vmatprep.subr.bf16.mxu0 0
  %312 = vmatpush1.bf16.msra.mxu0 %v233
  %313 = vmatprep.subr.bf16.mxu0 0
  %314 = vmatpush2.bf16.msra.mxu0 0
  %315 = vmatprep.subr.bf16.mxu0 0
  %316 = vmatpush2.bf16.msra.mxu0 0
  %317 = vmatprep.subr.bf16.mxu0 0
  %318 = vmatpush2.bf16.msra.mxu0 0
  %319 = vmatprep.subr.bf16.mxu0 0
  %320 = vmatpush2.bf16.msra.mxu0 0
  %321 = vmatprep.subr.bf16.mxu0 0
  %322 = vmatpush2.bf16.msra.mxu0 %v244
  %323 = vmatprep.subr.bf16.mxu0 0
  %324 = vmatpush2.bf16.msra.mxu0 %v243
  %325 = vmatprep.subr.bf16.mxu0 0
  %326 = vmatpush2.bf16.msra.mxu0 %v242
  %327 = vmatprep.subr.bf16.mxu0 0
  %328 = vmatpush2.bf16.msra.mxu0 %v241
  %329 = vmatprep.mubr.bf16.mxu0 %v259
  %330 = vmatmul.mubr.bf16.gmra.mxu0 %v146
  %v331 = vpop.f32.mrf.mxu0
  %v332 = vadd.f32 %v69, %v331
  %v333 = vpop.f32.mrf.mxu0
  %v334 = vpop.f32.mrf.mxu0
  %v335 = vadd.f32 %v69, %v334
  %v336 = vpop.f32.mrf.mxu0
  %337 = vmatprep.mubr.bf16.mxu0 %v262
  %338 = vmatmul.mubr.bf16.gmra.mxu0 %v148
  %v339 = vpop.f32.mrf.mxu0
  %v340 = vadd.f32 %v69, %v339
  %v341 = vpop.f32.mrf.mxu0
  %v342 = vpop.f32.mrf.mxu0
  %v343 = vadd.f32 %v69, %v342
  %v344 = vpop.f32.mrf.mxu0
  %345 = vmatprep.mubr.bf16.mxu0 %v265
  %346 = vmatmul.mubr.bf16.gmra.mxu0 %v150
  %v347 = vpop.f32.mrf.mxu0
  %v348 = vadd.f32 %v69, %v347
  %v349 = vpop.f32.mrf.mxu0
  %v350 = vpop.f32.mrf.mxu0
  %v351 = vadd.f32 %v69, %v350
  %v352 = vpop.f32.mrf.mxu0
  %353 = vmatprep.mubr.bf16.mxu0 %v268
  %354 = vmatmul.mubr.bf16.gmra.mxu0 %v152
  %v355 = vpop.f32.mrf.mxu0
  %v356 = vadd.f32 %v69, %v355
  %v357 = vpop.f32.mrf.mxu0
  %v358 = vpop.f32.mrf.mxu0
  %v359 = vadd.f32 %v69, %v358
  %v360 = vpop.f32.mrf.mxu0
  %361 = vmatprep.mubr.bf16.mxu0 %v271
  %362 = vmatmul.mubr.bf16.gmra.mxu0 %v154
  %v363 = vpop.f32.mrf.mxu0
  %v364 = vadd.f32 %v69, %v363
  %v365 = vpop.f32.mrf.mxu0
  %v366 = vpop.f32.mrf.mxu0
  %v367 = vadd.f32 %v69, %v366
  %v368 = vpop.f32.mrf.mxu0
  %369 = vmatprep.mubr.bf16.mxu0 %v274
  %370 = vmatmul.mubr.bf16.gmra.mxu0 %v156
  %v371 = vpop.f32.mrf.mxu0
  %v372 = vadd.f32 %v69, %v371
  %v373 = vpop.f32.mrf.mxu0
  %v374 = vpop.f32.mrf.mxu0
  %v375 = vadd.f32 %v69, %v374
  %v376 = vpop.f32.mrf.mxu0
  %377 = vmatprep.mubr.bf16.mxu0 %v277
  %378 = vmatmul.mubr.bf16.gmra.mxu0 %v158
  %v379 = vpop.f32.mrf.mxu0
  %v380 = vadd.f32 %v69, %v379
  %v381 = vpop.f32.mrf.mxu0
  %v382 = vpop.f32.mrf.mxu0
  %v383 = vadd.f32 %v69, %v382
  %v384 = vpop.f32.mrf.mxu0
  %385 = vmatprep.mubr.bf16.mxu0 %v280
  %386 = vmatmul.mubr.bf16.gmra.mxu0 %v160
  %v387 = vpop.f32.mrf.mxu0
  %v388 = vadd.f32 %v69, %v387
  %v389 = vpop.f32.mrf.mxu0
  %v390 = vpop.f32.mrf.mxu0
  %v391 = vadd.f32 %v69, %v390
  %v392 = vpop.f32.mrf.mxu0
  %393 = vmatprep.mubr.bf16.mxu0 %v283
  %394 = vmatmul.mubr.bf16.gmra.mxu0 %v162
  %v395 = vpop.f32.mrf.mxu0
  %v396 = vadd.f32 %v69, %v395
  %v397 = vpop.f32.mrf.mxu0
  %v398 = vpop.f32.mrf.mxu0
  %v399 = vadd.f32 %v69, %v398
  %v400 = vpop.f32.mrf.mxu0
  %401 = vmatprep.mubr.bf16.mxu0 %v286
  %402 = vmatmul.mubr.bf16.gmra.mxu0 %v164
  %v403 = vpop.f32.mrf.mxu0
  %v404 = vadd.f32 %v69, %v403
  %v405 = vpop.f32.mrf.mxu0
  %v406 = vpop.f32.mrf.mxu0
  %v407 = vadd.f32 %v69, %v406
  %v408 = vpop.f32.mrf.mxu0
  %409 = vmatprep.mubr.bf16.mxu0 %v289
  %410 = vmatmul.mubr.bf16.gmra.mxu0 %v166
  %v411 = vpop.f32.mrf.mxu0
  %v412 = vadd.f32 %v69, %v411
  %v413 = vpop.f32.mrf.mxu0
  %v414 = vpop.f32.mrf.mxu0
  %v415 = vadd.f32 %v69, %v414
  %v416 = vpop.f32.mrf.mxu0
  %417 = vmatprep.mubr.bf16.mxu0 %v292
  %418 = vmatmul.mubr.bf16.gmra.mxu0 %v168
  %v419 = vpop.f32.mrf.mxu0
  %v420 = vadd.f32 %v69, %v419
  %v421 = vpop.f32.mrf.mxu0
  %v422 = vpop.f32.mrf.mxu0
  %v423 = vadd.f32 %v69, %v422
  %v424 = vpop.f32.mrf.mxu0
  %425 = vmatprep.mubr.bf16.mxu0 %v295
  %426 = vmatmul.mubr.bf16.gmra.mxu0 %v170
  %v427 = vpop.f32.mrf.mxu0
  %v428 = vadd.f32 %v69, %v427
  %v429 = vpop.f32.mrf.mxu0
  %v430 = vpop.f32.mrf.mxu0
  %v431 = vpop.f32.mrf.mxu0
  %432 = vdwg.mxu0
  %v433 = vmax.f32 %v332, 0.0
  %v434 = vmax.f32 %v335, 0.0
  %v435 = vmax.f32 %v340, 0.0
  %v436 = vmax.f32 %v343, 0.0
  %v437 = vmax.f32 %v348, 0.0
  %v438 = vmax.f32 %v351, 0.0
  %v439 = vmax.f32 %v356, 0.0
  %v440 = vmax.f32 %v359, 0.0
  %v441 = vmax.f32 %v364, 0.0
  %v442 = vmax.f32 %v367, 0.0
  %v443 = vmax.f32 %v372, 0.0
  %v444 = vmax.f32 %v375, 0.0
  %v445 = vmax.f32 %v380, 0.0
  %v446 = vmax.f32 %v383, 0.0
  %v447 = vmax.f32 %v388, 0.0
  %v448 = vmax.f32 %v391, 0.0
  %v449 = vmax.f32 %v396, 0.0
  %v450 = vmax.f32 %v399, 0.0
  %v451 = vmax.f32 %v404, 0.0
  %v452 = vmax.f32 %v407, 0.0
  %v453 = vmax.f32 %v412, 0.0
  %v454 = vmax.f32 %v415, 0.0
  %v455 = vmax.f32 %v420, 0.0
  %v456 = vmax.f32 %v423, 0.0
  %v457 = vmax.f32 %v428, 0.0
  %v458 = vpack.c.bf16 %v434, %v433
  %v459 = vpack.c.bf16 %v436, %v435
  %v460 = vpack.c.bf16 %v438, %v437
  %v461 = vpack.c.bf16 %v440, %v439
  %v462 = vpack.c.bf16 %v442, %v441
  %v463 = vpack.c.bf16 %v444, %v443
  %v464 = vpack.c.bf16 %v446, %v445
  %v465 = vpack.c.bf16 %v448, %v447
  %v466 = vpack.c.bf16 %v450, %v449
  %v467 = vpack.c.bf16 %v452, %v451
  %v468 = vpack.c.bf16 %v454, %v453
  %v469 = vpack.c.bf16 %v456, %v455
  %v470 = vpack.c.bf16 %v457, %v457
  %v484 = vunpack.c.l.b16 %v458
  %v485 = vunpack.c.h.b16 %v458
  %v486 = vunpack.c.l.b16 %v459
  %v487 = vunpack.c.h.b16 %v459
  %v488 = vunpack.c.l.b16 %v460
  %v489 = vunpack.c.h.b16 %v460
  %v490 = vunpack.c.l.b16 %v461
  %v491 = vunpack.c.h.b16 %v461
  %v492 = vunpack.c.l.b16 %v462
  %v493 = vunpack.c.h.b16 %v462
  %v494 = vunpack.c.l.b16 %v463
  %v495 = vunpack.c.h.b16 %v463
  %v496 = vunpack.c.l.b16 %v464
  %v497 = vunpack.c.h.b16 %v464
  %v498 = vunpack.c.l.b16 %v465
  %v499 = vunpack.c.h.b16 %v465
  %v500 = vunpack.c.l.b16 %v466
  %v501 = vunpack.c.h.b16 %v466
  %v502 = vunpack.c.l.b16 %v467
  %v503 = vunpack.c.h.b16 %v467
  %v504 = vunpack.c.l.b16 %v468
  %v505 = vunpack.c.h.b16 %v468
  %v506 = vunpack.c.l.b16 %v469
  %v507 = vunpack.c.h.b16 %v469
  %v508 = vunpack.c.l.b16 %v470
  %v509 = vpack.c.b16 %v484, %v484
  %v510 = vpack.c.b16 %v485, %v485
  %v511 = vpack.c.b16 %v486, %v486
  %v512 = vpack.c.b16 %v487, %v487
  %v513 = vpack.c.b16 %v488, %v488
  %v514 = vpack.c.b16 %v489, %v489
  %v515 = vpack.c.b16 %v490, %v490
  %v516 = vpack.c.b16 %v491, %v491
  %v517 = vpack.c.b16 %v492, %v492
  %v518 = vpack.c.b16 %v493, %v493
  %v519 = vpack.c.b16 %v494, %v494
  %v520 = vpack.c.b16 %v495, %v495
  %v521 = vpack.c.b16 %v496, %v496
  %v522 = vpack.c.b16 %v497, %v497
  %v523 = vpack.c.b16 %v498, %v498
  %v524 = vpack.c.b16 %v499, %v499
  %v525 = vpack.c.b16 %v500, %v500
  %v526 = vpack.c.b16 %v501, %v501
  %v527 = vpack.c.b16 %v502, %v502
  %v528 = vpack.c.b16 %v503, %v503
  %v529 = vpack.c.b16 %v504, %v504
  %v530 = vpack.c.b16 %v505, %v505
  %v531 = vpack.c.b16 %v506, %v506
  %v532 = vpack.c.b16 %v507, %v507
  %v533 = vpack.c.b16 %v508, %v508
  %vm559 = vcmask 257024
  %560 = vst.msk [vmem:[%s3] sm:$0xf] %vm559, %v509
  %561 = vst.msk [vmem:[%s3 + $0x4] sm:$0xf] %vm559, %v510
  %562 = vst.msk [vmem:[%s3 + $0x8] sm:$0xf] %vm559, %v511
  %563 = vst.msk [vmem:[%s3 + $0xc] sm:$0xf] %vm559, %v512
  %564 = vst.msk [vmem:[%s3 + $0x10] sm:$0xf] %vm559, %v513
  %565 = vst.msk [vmem:[%s3 + $0x14] sm:$0xf] %vm559, %v514
  %566 = vst.msk [vmem:[%s3 + $0x18] sm:$0xf] %vm559, %v515
  %567 = vst.msk [vmem:[%s3 + $0x1c] sm:$0xf] %vm559, %v516
  %568 = vst.msk [vmem:[%s3 + $0x20] sm:$0xf] %vm559, %v517
  %569 = vst.msk [vmem:[%s3 + $0x24] sm:$0xf] %vm559, %v518
  %570 = vst.msk [vmem:[%s3 + $0x28] sm:$0xf] %vm559, %v519
  %571 = vst.msk [vmem:[%s3 + $0x2c] sm:$0xf] %vm559, %v520
  %572 = vst.msk [vmem:[%s3 + $0x30] sm:$0xf] %vm559, %v521
  %573 = vst.msk [vmem:[%s3 + $0x34] sm:$0xf] %vm559, %v522
  %574 = vst.msk [vmem:[%s3 + $0x38] sm:$0xf] %vm559, %v523
  %575 = vst.msk [vmem:[%s3 + $0x3c] sm:$0xf] %vm559, %v524
  %576 = vst.msk [vmem:[%s3 + $0x40] sm:$0xf] %vm559, %v525
  %577 = vst.msk [vmem:[%s3 + $0x44] sm:$0xf] %vm559, %v526
  %578 = vst.msk [vmem:[%s3 + $0x48] sm:$0xf] %vm559, %v527
  %579 = vst.msk [vmem:[%s3 + $0x4c] sm:$0xf] %vm559, %v528
  %580 = vst.msk [vmem:[%s3 + $0x50] sm:$0xf] %vm559, %v529
  %581 = vst.msk [vmem:[%s3 + $0x54] sm:$0xf] %vm559, %v530
  %582 = vst.msk [vmem:[%s3 + $0x58] sm:$0xf] %vm559, %v531
  %583 = vst.msk [vmem:[%s3 + $0x5c] sm:$0xf] %vm559, %v532
  %584 = vst.msk [vmem:[%s3 + $0x60] sm:$0xf] %vm559, %v533
  // Predicated region
  $region14: #{cnn_backbone_forward.4} parent=0 // pred_check
    _
  $region15: #{cnn_backbone_forward.4} parent=0 // pred_check_branch
    %586 = sbr.rel (0) target = $region17
  $region16: #{cnn_backbone_forward.4} parent=0 // pred_region
    _
  $region17: #{cnn_backbone_forward.4} parent=0 // pred_fallthru
    _
  // Predicated region
  $region18: #{cnn_backbone_forward.4} parent=0 // pred_check
    _
  $region19: #{cnn_backbone_forward.4} parent=0 // pred_check_branch
    %588 = sbr.rel (0) target = $region21
  $region20: #{cnn_backbone_forward.4} parent=0 // pred_region
    _
  $region21: #{cnn_backbone_forward.4} parent=0 // pred_fallthru
    _

// kernel: cnn_backbone_forward.5
$region0: #{cnn_backbone_forward.5}
  #allocation0 [shape = 'u32[]', space=smem, size = 0x4, offset = 0x4, fixed_abs, tag = 'smem constant byte address 0x4 - core index']
  #allocation1 [shape = 'u32[144,128]{1,0:T(1,128)}', space=vmem, size = 0x12000, scoped, tag = 'internal scratch']
  %s0 = inlined_call_operand.vmem [shape: bf16[32,512], index: 0, kind: input, shape index: {}]
  %s1 = inlined_call_operand.vmem [shape: bf16[512,64], index: 1, kind: input, shape index: {}]
  %s2 = inlined_call_operand.vmem [shape: f32[1,64], index: 2, kind: input, shape index: {}]
  %s3 = inlined_call_operand.vmem [shape: bf16[32,64], index: 3, kind: output, shape index: {}]
  %s4 = sld [smem:[#allocation0]]
  $region22: #{cnn_backbone_forward.5} parent=0
    _
  %s6 = ssub.s32 1, %s4
  %s7 = scalar_select 0, %s6, %s4
  // Predicated region
  $region2: #{cnn_backbone_forward.5} parent=0 // pred_check
    _
  $region3: #{cnn_backbone_forward.5} parent=0 // pred_check_branch
    %9 = sbr.rel (0) target = $region5
  $region4: #{cnn_backbone_forward.5} parent=0 // pred_region
    _
  $region5: #{cnn_backbone_forward.5} parent=0 // pred_fallthru
    _
  // Predicated region
  $region6: #{cnn_backbone_forward.5} parent=0 // pred_check
    _
  $region7: #{cnn_backbone_forward.5} parent=0 // pred_check_branch
    %11 = sbr.rel (0) target = $region9
  $region8: #{cnn_backbone_forward.5} parent=0 // pred_region
    _
  $region9: #{cnn_backbone_forward.5} parent=0 // pred_fallthru
    _
  // Predicated region
  $region10: #{cnn_backbone_forward.5} parent=0 // pred_check
    _
  $region11: #{cnn_backbone_forward.5} parent=0 // pred_check_branch
    %13 = sbr.rel (0) target = $region13
  $region12: #{cnn_backbone_forward.5} parent=0 // pred_region
    _
  $region13: #{cnn_backbone_forward.5} parent=0 // pred_fallthru
    _
  %v15 = vld [vmem:[%s0] sm:$0xff]
  %v16 = vld [vmem:[%s0 + $0x8] sm:$0xff]
  %v17 = vld [vmem:[%s0 + $0x10] sm:$0xff]
  %v18 = vld [vmem:[%s0 + $0x18] sm:$0xff]
  %v19 = vld [vmem:[%s0 + $0x20] sm:$0xff]
  %v20 = vld [vmem:[%s0 + $0x28] sm:$0xff]
  %v21 = vld [vmem:[%s0 + $0x30] sm:$0xff]
  %v22 = vld [vmem:[%s0 + $0x38] sm:$0xff]
  %v23 = vld [vmem:[%s1] sm:$0xf]
  %v24 = vld [vmem:[%s1 + $0x4] sm:$0xf]
  %v25 = vld [vmem:[%s1 + $0x8] sm:$0xf]
  %v26 = vld [vmem:[%s1 + $0xc] sm:$0xf]
  %v27 = vld [vmem:[%s1 + $0x10] sm:$0xf]
  %v28 = vld [vmem:[%s1 + $0x14] sm:$0xf]
  %v29 = vld [vmem:[%s1 + $0x18] sm:$0xf]
  %v30 = vld [vmem:[%s1 + $0x1c] sm:$0xf]
  %v31 = vld [vmem:[%s1 + $0x20] sm:$0xf]
  %v32 = vld [vmem:[%s1 + $0x24] sm:$0xf]
  %v33 = vld [vmem:[%s1 + $0x28] sm:$0xf]
  %v34 = vld [vmem:[%s1 + $0x2c] sm:$0xf]
  %v35 = vld [vmem:[%s1 + $0x30] sm:$0xf]
  %v36 = vld [vmem:[%s1 + $0x34] sm:$0xf]
  %v37 = vld [vmem:[%s1 + $0x38] sm:$0xf]
  %v38 = vld [vmem:[%s1 + $0x3c] sm:$0xf]
  %v39 = vld [vmem:[%s1 + $0x40] sm:$0xf]
  %v40 = vld [vmem:[%s1 + $0x44] sm:$0xf]
  %v41 = vld [vmem:[%s1 + $0x48] sm:$0xf]
  %v42 = vld [vmem:[%s1 + $0x4c] sm:$0xf]
  %v43 = vld [vmem:[%s1 + $0x50] sm:$0xf]
  %v44 = vld [vmem:[%s1 + $0x54] sm:$0xf]
  %v45 = vld [vmem:[%s1 + $0x58] sm:$0xf]
  %v46 = vld [vmem:[%s1 + $0x5c] sm:$0xf]
  %v47 = vld [vmem:[%s1 + $0x60] sm:$0xf]
  %v48 = vld [vmem:[%s1 + $0x64] sm:$0xf]
  %v49 = vld [vmem:[%s1 + $0x68] sm:$0xf]
  %v50 = vld [vmem:[%s1 + $0x6c] sm:$0xf]
  %v51 = vld [vmem:[%s1 + $0x70] sm:$0xf]
  %v52 = vld [vmem:[%s1 + $0x74] sm:$0xf]
  %v53 = vld [vmem:[%s1 + $0x78] sm:$0xf]
  %v54 = vld [vmem:[%s1 + $0x7c] sm:$0xf]
  %v55 = vld [vmem:[%s1 + $0x80] sm:$0xf]
  %v56 = vld [vmem:[%s1 + $0x84] sm:$0xf]
  %v57 = vld [vmem:[%s1 + $0x88] sm:$0xf]
  %v58 = vld [vmem:[%s1 + $0x8c] sm:$0xf]
  %v59 = vld [vmem:[%s1 + $0x90] sm:$0xf]
  %v60 = vld [vmem:[%s1 + $0x94] sm:$0xf]
  %v61 = vld [vmem:[%s1 + $0x98] sm:$0xf]
  %v62 = vld [vmem:[%s1 + $0x9c] sm:$0xf]
  %v63 = vld [vmem:[%s1 + $0xa0] sm:$0xf]
  %v64 = vld [vmem:[%s1 + $0xa4] sm:$0xf]
  %v65 = vld [vmem:[%s1 + $0xa8] sm:$0xf]
  %v66 = vld [vmem:[%s1 + $0xac] sm:$0xf]
  %v67 = vld [vmem:[%s1 + $0xb0] sm:$0xf]
  %v68 = vld [vmem:[%s1 + $0xb4] sm:$0xf]
  %v69 = vld [vmem:[%s1 + $0xb8] sm:$0xf]
  %v70 = vld [vmem:[%s1 + $0xbc] sm:$0xf]
  %v71 = vld [vmem:[%s1 + $0xc0] sm:$0xf]
  %v72 = vld [vmem:[%s1 + $0xc4] sm:$0xf]
  %v73 = vld [vmem:[%s1 + $0xc8] sm:$0xf]
  %v74 = vld [vmem:[%s1 + $0xcc] sm:$0xf]
  %v75 = vld [vmem:[%s1 + $0xd0] sm:$0xf]
  %v76 = vld [vmem:[%s1 + $0xd4] sm:$0xf]
  %v77 = vld [vmem:[%s1 + $0xd8] sm:$0xf]
  %v78 = vld [vmem:[%s1 + $0xdc] sm:$0xf]
  %v79 = vld [vmem:[%s1 + $0xe0] sm:$0xf]
  %v80 = vld [vmem:[%s1 + $0xe4] sm:$0xf]
  %v81 = vld [vmem:[%s1 + $0xe8] sm:$0xf]
  %v82 = vld [vmem:[%s1 + $0xec] sm:$0xf]
  %v83 = vld [vmem:[%s1 + $0xf0] sm:$0xf]
  %v84 = vld [vmem:[%s1 + $0xf4] sm:$0xf]
  %v85 = vld [vmem:[%s1 + $0xf8] sm:$0xf]
  %v86 = vld [vmem:[%s1 + $0xfc] sm:$0xf]
  %v87 = vld [vmem:[%s2] sm:$0x1]
  %v89 = vlaneseq
  %v90 = vshrl.u32 %v89, 7
  %v91 = vsub.s32 0, %v90
  %v92 = vrot.slane %v87, %v91
  %v102 = vunpack.c.l.b16 %v15
  %v103 = vunpack.c.h.b16 %v15
  %v104 = vunpack.c.l.b16 %v16
  %v105 = vunpack.c.h.b16 %v16
  %v106 = vunpack.c.l.b16 %v17
  %v107 = vunpack.c.h.b16 %v17
  %v108 = vunpack.c.l.b16 %v18
  %v109 = vunpack.c.h.b16 %v18
  %v110 = vunpack.c.l.b16 %v19
  %v111 = vunpack.c.h.b16 %v19
  %v112 = vunpack.c.l.b16 %v20
  %v113 = vunpack.c.h.b16 %v20
  %v114 = vunpack.c.l.b16 %v21
  %v115 = vunpack.c.h.b16 %v21
  %v116 = vunpack.c.l.b16 %v22
  %v117 = vunpack.c.h.b16 %v22
  %v118 = vpack.c.b16 %v106, %v102
  %v119 = vpack.c.b16 %v107, %v103
  %v120 = vpack.c.b16 %v108, %v104
  %v121 = vpack.c.b16 %v109, %v105
  %v122 = vpack.c.b16 %v114, %v110
  %v123 = vpack.c.b16 %v115, %v111
  %v124 = vpack.c.b16 %v116, %v112
  %v125 = vpack.c.b16 %v117, %v113
  %v198 = vunpack.c.l.b16 %v23
  %v199 = vunpack.c.l.b16 %v24
  %v200 = vunpack.c.l.b16 %v25
  %v201 = vunpack.c.l.b16 %v26
  %v202 = vunpack.c.l.b16 %v27
  %v203 = vunpack.c.l.b16 %v28
  %v204 = vunpack.c.l.b16 %v29
  %v205 = vunpack.c.l.b16 %v30
  %v206 = vunpack.c.l.b16 %v31
  %v207 = vunpack.c.l.b16 %v32
  %v208 = vunpack.c.l.b16 %v33
  %v209 = vunpack.c.l.b16 %v34
  %v210 = vunpack.c.l.b16 %v35
  %v211 = vunpack.c.l.b16 %v36
  %v212 = vunpack.c.l.b16 %v37
  %v213 = vunpack.c.l.b16 %v38
  %v214 = vunpack.c.l.b16 %v39
  %v215 = vunpack.c.l.b16 %v40
  %v216 = vunpack.c.l.b16 %v41
  %v217 = vunpack.c.l.b16 %v42
  %v218 = vunpack.c.l.b16 %v43
  %v219 = vunpack.c.l.b16 %v44
  %v220 = vunpack.c.l.b16 %v45
  %v221 = vunpack.c.l.b16 %v46
  %v222 = vunpack.c.l.b16 %v47
  %v223 = vunpack.c.l.b16 %v48
  %v224 = vunpack.c.l.b16 %v49
  %v225 = vunpack.c.l.b16 %v50
  %v226 = vunpack.c.l.b16 %v51
  %v227 = vunpack.c.l.b16 %v52
  %v228 = vunpack.c.l.b16 %v53
  %v229 = vunpack.c.l.b16 %v54
  %v230 = vunpack.c.l.b16 %v55
  %v231 = vunpack.c.l.b16 %v56
  %v232 = vunpack.c.l.b16 %v57
  %v233 = vunpack.c.l.b16 %v58
  %v234 = vunpack.c.l.b16 %v59
  %v235 = vunpack.c.l.b16 %v60
  %v236 = vunpack.c.l.b16 %v61
  %v237 = vunpack.c.l.b16 %v62
  %v238 = vunpack.c.l.b16 %v63
  %v239 = vunpack.c.l.b16 %v64
  %v240 = vunpack.c.l.b16 %v65
  %v241 = vunpack.c.l.b16 %v66
  %v242 = vunpack.c.l.b16 %v67
  %v243 = vunpack.c.l.b16 %v68
  %v244 = vunpack.c.l.b16 %v69
  %v245 = vunpack.c.l.b16 %v70
  %v246 = vunpack.c.l.b16 %v71
  %v247 = vunpack.c.l.b16 %v72
  %v248 = vunpack.c.l.b16 %v73
  %v249 = vunpack.c.l.b16 %v74
  %v250 = vunpack.c.l.b16 %v75
  %v251 = vunpack.c.l.b16 %v76
  %v252 = vunpack.c.l.b16 %v77
  %v253 = vunpack.c.l.b16 %v78
  %v254 = vunpack.c.l.b16 %v79
  %v255 = vunpack.c.l.b16 %v80
  %v256 = vunpack.c.l.b16 %v81
  %v257 = vunpack.c.l.b16 %v82
  %v258 = vunpack.c.l.b16 %v83
  %v259 = vunpack.c.l.b16 %v84
  %v260 = vunpack.c.l.b16 %v85
  %v261 = vunpack.c.l.b16 %v86
  %v262 = vpack.c.b16 %v199, %v198
  %v263 = vpack.c.b16 %v201, %v200
  %v264 = vpack.c.b16 %v203, %v202
  %v265 = vpack.c.b16 %v205, %v204
  %v266 = vpack.c.b16 %v207, %v206
  %v267 = vpack.c.b16 %v209, %v208
  %v268 = vpack.c.b16 %v211, %v210
  %v269 = vpack.c.b16 %v213, %v212
  %v270 = vpack.c.b16 %v215, %v214
  %v271 = vpack.c.b16 %v217, %v216
  %v272 = vpack.c.b16 %v219, %v218
  %v273 = vpack.c.b16 %v221, %v220
  %v274 = vpack.c.b16 %v223, %v222
  %v275 = vpack.c.b16 %v225, %v224
  %v276 = vpack.c.b16 %v227, %v226
  %v277 = vpack.c.b16 %v229, %v228
  %v278 = vpack.c.b16 %v231, %v230
  %v279 = vpack.c.b16 %v233, %v232
  %v280 = vpack.c.b16 %v235, %v234
  %v281 = vpack.c.b16 %v237, %v236
  %v282 = vpack.c.b16 %v239, %v238
  %v283 = vpack.c.b16 %v241, %v240
  %v284 = vpack.c.b16 %v243, %v242
  %v285 = vpack.c.b16 %v245, %v244
  %v286 = vpack.c.b16 %v247, %v246
  %v287 = vpack.c.b16 %v249, %v248
  %v288 = vpack.c.b16 %v251, %v250
  %v289 = vpack.c.b16 %v253, %v252
  %v290 = vpack.c.b16 %v255, %v254
  %v291 = vpack.c.b16 %v257, %v256
  %v292 = vpack.c.b16 %v259, %v258
  %v293 = vpack.c.b16 %v261, %v260
  %326 = vmatprep.subr.bf16.mxu0 0
  %327 = vmatpush1.bf16.msra.mxu0 %v269
  %328 = vmatprep.subr.bf16.mxu0 0
  %329 = vmatpush1.bf16.msra.mxu0 %v268
  %330 = vmatprep.subr.bf16.mxu0 0
  %331 = vmatpush1.bf16.msra.mxu0 %v267
  %332 = vmatprep.subr.bf16.mxu0 0
  %333 = vmatpush1.bf16.msra.mxu0 %v266
  %334 = vmatprep.subr.bf16.mxu0 0
  %335 = vmatpush1.bf16.msra.mxu0 %v265
  %336 = vmatprep.subr.bf16.mxu0 0
  %337 = vmatpush1.bf16.msra.mxu0 %v264
  %338 = vmatprep.subr.bf16.mxu0 0
  %339 = vmatpush1.bf16.msra.mxu0 %v263
  %340 = vmatprep.subr.bf16.mxu0 0
  %341 = vmatpush1.bf16.msra.mxu0 %v262
  %342 = vmatprep.subr.bf16.mxu0 0
  %343 = vmatpush2.bf16.msra.mxu0 %v277
  %344 = vmatprep.subr.bf16.mxu0 0
  %345 = vmatpush2.bf16.msra.mxu0 %v276
  %346 = vmatprep.subr.bf16.mxu0 0
  %347 = vmatpush2.bf16.msra.mxu0 %v275
  %348 = vmatprep.subr.bf16.mxu0 0
  %349 = vmatpush2.bf16.msra.mxu0 %v274
  %350 = vmatprep.subr.bf16.mxu0 0
  %351 = vmatpush2.bf16.msra.mxu0 %v273
  %352 = vmatprep.subr.bf16.mxu0 0
  %353 = vmatpush2.bf16.msra.mxu0 %v272
  %354 = vmatprep.subr.bf16.mxu0 0
  %355 = vmatpush2.bf16.msra.mxu0 %v271
  %356 = vmatprep.subr.bf16.mxu0 0
  %357 = vmatpush2.bf16.msra.mxu0 %v270
  %358 = vmatprep.mubr.bf16.mxu0 %v119
  %359 = vmatmul.mubr.bf16.gmra.mxu0 %v118
  %v360 = vpop.f32.mrf.mxu0
  %v361 = vadd.f32 %v92, %v360
  %v362 = vpop.f32.mrf.mxu0
  %v363 = vpop.f32.mrf.mxu0
  %v364 = vadd.f32 %v92, %v363
  %v365 = vpop.f32.mrf.mxu0
  %366 = vmatprep.mubr.bf16.mxu0 %v123
  %367 = vmatmul.mubr.bf16.gmra.mxu0 %v122
  %v368 = vpop.f32.mrf.mxu0
  %v369 = vadd.f32 %v92, %v368
  %v370 = vpop.f32.mrf.mxu0
  %v371 = vpop.f32.mrf.mxu0
  %v372 = vadd.f32 %v92, %v371
  %v373 = vpop.f32.mrf.mxu0
  %374 = vdwg.mxu0
  %375 = vmatprep.subr.bf16.mxu0 0
  %376 = vmatpush1.bf16.msra.mxu0 %v285
  %377 = vmatprep.subr.bf16.mxu0 0
  %378 = vmatpush1.bf16.msra.mxu0 %v284
  %379 = vmatprep.subr.bf16.mxu0 0
  %380 = vmatpush1.bf16.msra.mxu0 %v283
  %381 = vmatprep.subr.bf16.mxu0 0
  %382 = vmatpush1.bf16.msra.mxu0 %v282
  %383 = vmatprep.subr.bf16.mxu0 0
  %384 = vmatpush1.bf16.msra.mxu0 %v281
  %385 = vmatprep.subr.bf16.mxu0 0
  %386 = vmatpush1.bf16.msra.mxu0 %v280
  %387 = vmatprep.subr.bf16.mxu0 0
  %388 = vmatpush1.bf16.msra.mxu0 %v279
  %389 = vmatprep.subr.bf16.mxu0 0
  %390 = vmatpush1.bf16.msra.mxu0 %v278
  %391 = vmatprep.subr.bf16.mxu0 0
  %392 = vmatpush2.bf16.msra.mxu0 %v293
  %393 = vmatprep.subr.bf16.mxu0 0
  %394 = vmatpush2.bf16.msra.mxu0 %v292
  %395 = vmatprep.subr.bf16.mxu0 0
  %396 = vmatpush2.bf16.msra.mxu0 %v291
  %397 = vmatprep.subr.bf16.mxu0 0
  %398 = vmatpush2.bf16.msra.mxu0 %v290
  %399 = vmatprep.subr.bf16.mxu0 0
  %400 = vmatpush2.bf16.msra.mxu0 %v289
  %401 = vmatprep.subr.bf16.mxu0 0
  %402 = vmatpush2.bf16.msra.mxu0 %v288
  %403 = vmatprep.subr.bf16.mxu0 0
  %404 = vmatpush2.bf16.msra.mxu0 %v287
  %405 = vmatprep.subr.bf16.mxu0 0
  %406 = vmatpush2.bf16.msra.mxu0 %v286
  %407 = vmatprep.mubr.bf16.mxu0 %v121
  %408 = vmatmul.mubr.bf16.gmra.mxu0 %v120
  %v409 = vpop.f32.mrf.mxu0
  %v410 = vadd.f32 %v361, %v409
  %v411 = vpop.f32.mrf.mxu0
  %v412 = vpop.f32.mrf.mxu0
  %v413 = vadd.f32 %v364, %v412
  %v414 = vpop.f32.mrf.mxu0
  %415 = vmatprep.mubr.bf16.mxu0 %v125
  %416 = vmatmul.mubr.bf16.gmra.mxu0 %v124
  %v417 = vpop.f32.mrf.mxu0
  %v418 = vadd.f32 %v369, %v417
  %v419 = vpop.f32.mrf.mxu0
  %v420 = vpop.f32.mrf.mxu0
  %v421 = vadd.f32 %v372, %v420
  %v422 = vpop.f32.mrf.mxu0
  %423 = vdwg.mxu0
  %v424 = vmax.f32 %v410, 0.0
  %v425 = vmax.f32 %v413, 0.0
  %v426 = vmax.f32 %v418, 0.0
  %v427 = vmax.f32 %v421, 0.0
  %v428 = vpack.c.bf16 %v425, %v424
  %v429 = vpack.c.bf16 %v427, %v426
  %v432 = vunpack.c.l.b16 %v428
  %v433 = vunpack.c.h.b16 %v428
  %v434 = vunpack.c.l.b16 %v429
  %v435 = vunpack.c.h.b16 %v429
  %v436 = vpack.c.b16 %v432, %v432
  %v437 = vpack.c.b16 %v433, %v433
  %v438 = vpack.c.b16 %v434, %v434
  %v439 = vpack.c.b16 %v435, %v435
  %vm444 = vcmask 519168
  %445 = vst.msk [vmem:[%s3] sm:$0xf] %vm444, %v436
  %446 = vst.msk [vmem:[%s3 + $0x4] sm:$0xf] %vm444, %v437
  %447 = vst.msk [vmem:[%s3 + $0x8] sm:$0xf] %vm444, %v438
  %448 = vst.msk [vmem:[%s3 + $0xc] sm:$0xf] %vm444, %v439
  // Predicated region
  $region14: #{cnn_backbone_forward.5} parent=0 // pred_check
    _
  $region15: #{cnn_backbone_forward.5} parent=0 // pred_check_branch
    %450 = sbr.rel (0) target = $region17
  $region16: #{cnn_backbone_forward.5} parent=0 // pred_region
    _
  $region17: #{cnn_backbone_forward.5} parent=0 // pred_fallthru
    _
  // Predicated region
  $region18: #{cnn_backbone_forward.5} parent=0 // pred_check
    _
  $region19: #{cnn_backbone_forward.5} parent=0 // pred_check_branch
    %452 = sbr.rel (0) target = $region21
  $region20: #{cnn_backbone_forward.5} parent=0 // pred_region
    _
  $region21: #{cnn_backbone_forward.5} parent=0 // pred_fallthru
    _

// kernel: cnn_backbone_forward.6
$region0: #{cnn_backbone_forward.6}
  #allocation0 [shape = 'u32[]', space=smem, size = 0x4, offset = 0x4, fixed_abs, tag = 'smem constant byte address 0x4 - core index']
  #allocation1 [shape = 'u32[144,128]{1,0:T(1,128)}', space=vmem, size = 0x12000, scoped, tag = 'internal scratch']
  %s0 = inlined_call_operand.vmem [shape: bf16[8,576], index: 0, kind: input, shape index: {}]
  %s1 = inlined_call_operand.vmem [shape: bf16[576,64], index: 1, kind: input, shape index: {}]
  %s2 = inlined_call_operand.vmem [shape: f32[1,64], index: 2, kind: input, shape index: {}]
  %s3 = inlined_call_operand.vmem [shape: bf16[8,64], index: 3, kind: output, shape index: {}]
  %s4 = sld [smem:[#allocation0]]
  $region22: #{cnn_backbone_forward.6} parent=0
    _
  %s6 = ssub.s32 1, %s4
  %s7 = scalar_select 0, %s6, %s4
  // Predicated region
  $region2: #{cnn_backbone_forward.6} parent=0 // pred_check
    _
  $region3: #{cnn_backbone_forward.6} parent=0 // pred_check_branch
    %9 = sbr.rel (0) target = $region5
  $region4: #{cnn_backbone_forward.6} parent=0 // pred_region
    _
  $region5: #{cnn_backbone_forward.6} parent=0 // pred_fallthru
    _
  // Predicated region
  $region6: #{cnn_backbone_forward.6} parent=0 // pred_check
    _
  $region7: #{cnn_backbone_forward.6} parent=0 // pred_check_branch
    %11 = sbr.rel (0) target = $region9
  $region8: #{cnn_backbone_forward.6} parent=0 // pred_region
    _
  $region9: #{cnn_backbone_forward.6} parent=0 // pred_fallthru
    _
  // Predicated region
  $region10: #{cnn_backbone_forward.6} parent=0 // pred_check
    _
  $region11: #{cnn_backbone_forward.6} parent=0 // pred_check_branch
    %13 = sbr.rel (0) target = $region13
  $region12: #{cnn_backbone_forward.6} parent=0 // pred_region
    _
  $region13: #{cnn_backbone_forward.6} parent=0 // pred_fallthru
    _
  %v15 = vld [vmem:[%s0] sm:$0xff]
  %v16 = vld [vmem:[%s0 + $0x8] sm:$0xff]
  %v17 = vld [vmem:[%s0 + $0x10] sm:$0xf]
  %v18 = vld [vmem:[%s1] sm:$0xf]
  %v19 = vld [vmem:[%s1 + $0x4] sm:$0xf]
  %v20 = vld [vmem:[%s1 + $0x8] sm:$0xf]
  %v21 = vld [vmem:[%s1 + $0xc] sm:$0xf]
  %v22 = vld [vmem:[%s1 + $0x10] sm:$0xf]
  %v23 = vld [vmem:[%s1 + $0x14] sm:$0xf]
  %v24 = vld [vmem:[%s1 + $0x18] sm:$0xf]
  %v25 = vld [vmem:[%s1 + $0x1c] sm:$0xf]
  %v26 = vld [vmem:[%s1 + $0x20] sm:$0xf]
  %v27 = vld [vmem:[%s1 + $0x24] sm:$0xf]
  %v28 = vld [vmem:[%s1 + $0x28] sm:$0xf]
  %v29 = vld [vmem:[%s1 + $0x2c] sm:$0xf]
  %v30 = vld [vmem:[%s1 + $0x30] sm:$0xf]
  %v31 = vld [vmem:[%s1 + $0x34] sm:$0xf]
  %v32 = vld [vmem:[%s1 + $0x38] sm:$0xf]
  %v33 = vld [vmem:[%s1 + $0x3c] sm:$0xf]
  %v34 = vld [vmem:[%s1 + $0x40] sm:$0xf]
  %v35 = vld [vmem:[%s1 + $0x44] sm:$0xf]
  %v36 = vld [vmem:[%s1 + $0x48] sm:$0xf]
  %v37 = vld [vmem:[%s1 + $0x4c] sm:$0xf]
  %v38 = vld [vmem:[%s1 + $0x50] sm:$0xf]
  %v39 = vld [vmem:[%s1 + $0x54] sm:$0xf]
  %v40 = vld [vmem:[%s1 + $0x58] sm:$0xf]
  %v41 = vld [vmem:[%s1 + $0x5c] sm:$0xf]
  %v42 = vld [vmem:[%s1 + $0x60] sm:$0xf]
  %v43 = vld [vmem:[%s1 + $0x64] sm:$0xf]
  %v44 = vld [vmem:[%s1 + $0x68] sm:$0xf]
  %v45 = vld [vmem:[%s1 + $0x6c] sm:$0xf]
  %v46 = vld [vmem:[%s1 + $0x70] sm:$0xf]
  %v47 = vld [vmem:[%s1 + $0x74] sm:$0xf]
  %v48 = vld [vmem:[%s1 + $0x78] sm:$0xf]
  %v49 = vld [vmem:[%s1 + $0x7c] sm:$0xf]
  %v50 = vld [vmem:[%s1 + $0x80] sm:$0xf]
  %v51 = vld [vmem:[%s1 + $0x84] sm:$0xf]
  %v52 = vld [vmem:[%s1 + $0x88] sm:$0xf]
  %v53 = vld [vmem:[%s1 + $0x8c] sm:$0xf]
  %v54 = vld [vmem:[%s1 + $0x90] sm:$0xf]
  %v55 = vld [vmem:[%s1 + $0x94] sm:$0xf]
  %v56 = vld [vmem:[%s1 + $0x98] sm:$0xf]
  %v57 = vld [vmem:[%s1 + $0x9c] sm:$0xf]
  %v58 = vld [vmem:[%s1 + $0xa0] sm:$0xf]
  %v59 = vld [vmem:[%s1 + $0xa4] sm:$0xf]
  %v60 = vld [vmem:[%s1 + $0xa8] sm:$0xf]
  %v61 = vld [vmem:[%s1 + $0xac] sm:$0xf]
  %v62 = vld [vmem:[%s1 + $0xb0] sm:$0xf]
  %v63 = vld [vmem:[%s1 + $0xb4] sm:$0xf]
  %v64 = vld [vmem:[%s1 + $0xb8] sm:$0xf]
  %v65 = vld [vmem:[%s1 + $0xbc] sm:$0xf]
  %v66 = vld [vmem:[%s1 + $0xc0] sm:$0xf]
  %v67 = vld [vmem:[%s1 + $0xc4] sm:$0xf]
  %v68 = vld [vmem:[%s1 + $0xc8] sm:$0xf]
  %v69 = vld [vmem:[%s1 + $0xcc] sm:$0xf]
  %v70 = vld [vmem:[%s1 + $0xd0] sm:$0xf]
  %v71 = vld [vmem:[%s1 + $0xd4] sm:$0xf]
  %v72 = vld [vmem:[%s1 + $0xd8] sm:$0xf]
  %v73 = vld [vmem:[%s1 + $0xdc] sm:$0xf]
  %v74 = vld [vmem:[%s1 + $0xe0] sm:$0xf]
  %v75 = vld [vmem:[%s1 + $0xe4] sm:$0xf]
  %v76 = vld [vmem:[%s1 + $0xe8] sm:$0xf]
  %v77 = vld [vmem:[%s1 + $0xec] sm:$0xf]
  %v78 = vld [vmem:[%s1 + $0xf0] sm:$0xf]
  %v79 = vld [vmem:[%s1 + $0xf4] sm:$0xf]
  %v80 = vld [vmem:[%s1 + $0xf8] sm:$0xf]
  %v81 = vld [vmem:[%s1 + $0xfc] sm:$0xf]
  %v82 = vld [vmem:[%s1 + $0x100] sm:$0xf]
  %v83 = vld [vmem:[%s1 + $0x104] sm:$0xf]
  %v84 = vld [vmem:[%s1 + $0x108] sm:$0xf]
  %v85 = vld [vmem:[%s1 + $0x10c] sm:$0xf]
  %v86 = vld [vmem:[%s1 + $0x110] sm:$0xf]
  %v87 = vld [vmem:[%s1 + $0x114] sm:$0xf]
  %v88 = vld [vmem:[%s1 + $0x118] sm:$0xf]
  %v89 = vld [vmem:[%s1 + $0x11c] sm:$0xf]
  %v90 = vld [vmem:[%s2] sm:$0x1]
  %v92 = vlaneseq
  %v93 = vshrl.u32 %v92, 7
  %v94 = vsub.s32 0, %v93
  %v95 = vrot.slane %v90, %v94
  %v100 = vunpack.c.l.b16 %v15
  %v101 = vunpack.c.h.b16 %v15
  %v102 = vunpack.c.l.b16 %v16
  %v103 = vunpack.c.h.b16 %v16
  %v104 = vunpack.c.l.b16 %v17
  %v105 = vpack.c.b16 %v100, %v100
  %v106 = vpack.c.b16 %v101, %v101
  %v107 = vpack.c.b16 %v102, %v102
  %v108 = vpack.c.b16 %v103, %v103
  %v109 = vpack.c.b16 %v104, %v104
  %v186 = vunpack.c.l.b16 %v18
  %v187 = vunpack.c.l.b16 %v19
  %v188 = vunpack.c.l.b16 %v20
  %v189 = vunpack.c.l.b16 %v21
  %v190 = vunpack.c.l.b16 %v22
  %v191 = vunpack.c.l.b16 %v23
  %v192 = vunpack.c.l.b16 %v24
  %v193 = vunpack.c.l.b16 %v25
  %v194 = vunpack.c.l.b16 %v26
  %v195 = vunpack.c.l.b16 %v27
  %v196 = vunpack.c.l.b16 %v28
  %v197 = vunpack.c.l.b16 %v29
  %v198 = vunpack.c.l.b16 %v30
  %v199 = vunpack.c.l.b16 %v31
  %v200 = vunpack.c.l.b16 %v32
  %v201 = vunpack.c.l.b16 %v33
  %v202 = vunpack.c.l.b16 %v34
  %v203 = vunpack.c.l.b16 %v35
  %v204 = vunpack.c.l.b16 %v36
  %v205 = vunpack.c.l.b16 %v37
  %v206 = vunpack.c.l.b16 %v38
  %v207 = vunpack.c.l.b16 %v39
  %v208 = vunpack.c.l.b16 %v40
  %v209 = vunpack.c.l.b16 %v41
  %v210 = vunpack.c.l.b16 %v42
  %v211 = vunpack.c.l.b16 %v43
  %v212 = vunpack.c.l.b16 %v44
  %v213 = vunpack.c.l.b16 %v45
  %v214 = vunpack.c.l.b16 %v46
  %v215 = vunpack.c.l.b16 %v47
  %v216 = vunpack.c.l.b16 %v48
  %v217 = vunpack.c.l.b16 %v49
  %v218 = vunpack.c.l.b16 %v50
  %v219 = vunpack.c.l.b16 %v51
  %v220 = vunpack.c.l.b16 %v52
  %v221 = vunpack.c.l.b16 %v53
  %v222 = vunpack.c.l.b16 %v54
  %v223 = vunpack.c.l.b16 %v55
  %v224 = vunpack.c.l.b16 %v56
  %v225 = vunpack.c.l.b16 %v57
  %v226 = vunpack.c.l.b16 %v58
  %v227 = vunpack.c.l.b16 %v59
  %v228 = vunpack.c.l.b16 %v60
  %v229 = vunpack.c.l.b16 %v61
  %v230 = vunpack.c.l.b16 %v62
  %v231 = vunpack.c.l.b16 %v63
  %v232 = vunpack.c.l.b16 %v64
  %v233 = vunpack.c.l.b16 %v65
  %v234 = vunpack.c.l.b16 %v66
  %v235 = vunpack.c.l.b16 %v67
  %v236 = vunpack.c.l.b16 %v68
  %v237 = vunpack.c.l.b16 %v69
  %v238 = vunpack.c.l.b16 %v70
  %v239 = vunpack.c.l.b16 %v71
  %v240 = vunpack.c.l.b16 %v72
  %v241 = vunpack.c.l.b16 %v73
  %v242 = vunpack.c.l.b16 %v74
  %v243 = vunpack.c.l.b16 %v75
  %v244 = vunpack.c.l.b16 %v76
  %v245 = vunpack.c.l.b16 %v77
  %v246 = vunpack.c.l.b16 %v78
  %v247 = vunpack.c.l.b16 %v79
  %v248 = vunpack.c.l.b16 %v80
  %v249 = vunpack.c.l.b16 %v81
  %v250 = vunpack.c.l.b16 %v82
  %v251 = vunpack.c.l.b16 %v83
  %v252 = vunpack.c.l.b16 %v84
  %v253 = vunpack.c.l.b16 %v85
  %v254 = vunpack.c.l.b16 %v86
  %v255 = vunpack.c.l.b16 %v87
  %v256 = vunpack.c.l.b16 %v88
  %v257 = vunpack.c.l.b16 %v89
  %v258 = vpack.c.b16 %v187, %v186
  %v259 = vpack.c.b16 %v189, %v188
  %v260 = vpack.c.b16 %v191, %v190
  %v261 = vpack.c.b16 %v193, %v192
  %v262 = vpack.c.b16 %v195, %v194
  %v263 = vpack.c.b16 %v197, %v196
  %v264 = vpack.c.b16 %v199, %v198
  %v265 = vpack.c.b16 %v201, %v200
  %v266 = vpack.c.b16 %v203, %v202
  %v267 = vpack.c.b16 %v205, %v204
  %v268 = vpack.c.b16 %v207, %v206
  %v269 = vpack.c.b16 %v209, %v208
  %v270 = vpack.c.b16 %v211, %v210
  %v271 = vpack.c.b16 %v213, %v212
  %v272 = vpack.c.b16 %v215, %v214
  %v273 = vpack.c.b16 %v217, %v216
  %v274 = vpack.c.b16 %v219, %v218
  %v275 = vpack.c.b16 %v221, %v220
  %v276 = vpack.c.b16 %v223, %v222
  %v277 = vpack.c.b16 %v225, %v224
  %v278 = vpack.c.b16 %v227, %v226
  %v279 = vpack.c.b16 %v229, %v228
  %v280 = vpack.c.b16 %v231, %v230
  %v281 = vpack.c.b16 %v233, %v232
  %v282 = vpack.c.b16 %v235, %v234
  %v283 = vpack.c.b16 %v237, %v236
  %v284 = vpack.c.b16 %v239, %v238
  %v285 = vpack.c.b16 %v241, %v240
  %v286 = vpack.c.b16 %v243, %v242
  %v287 = vpack.c.b16 %v245, %v244
  %v288 = vpack.c.b16 %v247, %v246
  %v289 = vpack.c.b16 %v249, %v248
  %v290 = vpack.c.b16 %v251, %v250
  %v291 = vpack.c.b16 %v253, %v252
  %v292 = vpack.c.b16 %v255, %v254
  %v293 = vpack.c.b16 %v257, %v256
  %vm330 = vcmask 523264
  %v332 = vsel %vm330, %v109, 0
  %334 = vmatprep.subr.bf16.mxu0 0
  %335 = vmatpush1.bf16.msra.mxu0 %v265
  %336 = vmatprep.subr.bf16.mxu0 0
  %337 = vmatpush1.bf16.msra.mxu0 %v264
  %338 = vmatprep.subr.bf16.mxu0 0
  %339 = vmatpush1.bf16.msra.mxu0 %v263
  %340 = vmatprep.subr.bf16.mxu0 0
  %341 = vmatpush1.bf16.msra.mxu0 %v262
  %342 = vmatprep.subr.bf16.mxu0 0
  %343 = vmatpush1.bf16.msra.mxu0 %v261
  %344 = vmatprep.subr.bf16.mxu0 0
  %345 = vmatpush1.bf16.msra.mxu0 %v260
  %346 = vmatprep.subr.bf16.mxu0 0
  %347 = vmatpush1.bf16.msra.mxu0 %v259
  %348 = vmatprep.subr.bf16.mxu0 0
  %349 = vmatpush1.bf16.msra.mxu0 %v258
  %350 = vmatprep.subr.bf16.mxu0 0
  %351 = vmatpush2.bf16.msra.mxu0 %v273
  %352 = vmatprep.subr.bf16.mxu0 0
  %353 = vmatpush2.bf16.msra.mxu0 %v272
  %354 = vmatprep.subr.bf16.mxu0 0
  %355 = vmatpush2.bf16.msra.mxu0 %v271
  %356 = vmatprep.subr.bf16.mxu0 0
  %357 = vmatpush2.bf16.msra.mxu0 %v270
  %358 = vmatprep.subr.bf16.mxu0 0
  %359 = vmatpush2.bf16.msra.mxu0 %v269
  %360 = vmatprep.subr.bf16.mxu0 0
  %361 = vmatpush2.bf16.msra.mxu0 %v268
  %362 = vmatprep.subr.bf16.mxu0 0
  %363 = vmatpush2.bf16.msra.mxu0 %v267
  %364 = vmatprep.subr.bf16.mxu0 0
  %365 = vmatpush2.bf16.msra.mxu0 %v266
  %366 = vmatprep.mubr.bf16.mxu0 %v106
  %367 = vmatmul.mubr.bf16.gmra.mxu0 %v105
  %v368 = vpop.f32.mrf.mxu0
  %v369 = vadd.f32 %v95, %v368
  %v370 = vpop.f32.mrf.mxu0
  %v371 = vpop.f32.mrf.mxu0
  %v372 = vpop.f32.mrf.mxu0
  %373 = vdwg.mxu0
  %374 = vmatprep.subr.bf16.mxu0 0
  %375 = vmatpush1.bf16.msra.mxu0 %v281
  %376 = vmatprep.subr.bf16.mxu0 0
  %377 = vmatpush1.bf16.msra.mxu0 %v280
  %378 = vmatprep.subr.bf16.mxu0 0
  %379 = vmatpush1.bf16.msra.mxu0 %v279
  %380 = vmatprep.subr.bf16.mxu0 0
  %381 = vmatpush1.bf16.msra.mxu0 %v278
  %382 = vmatprep.subr.bf16.mxu0 0
  %383 = vmatpush1.bf16.msra.mxu0 %v277
  %384 = vmatprep.subr.bf16.mxu0 0
  %385 = vmatpush1.bf16.msra.mxu0 %v276
  %386 = vmatprep.subr.bf16.mxu0 0
  %387 = vmatpush1.bf16.msra.mxu0 %v275
  %388 = vmatprep.subr.bf16.mxu0 0
  %389 = vmatpush1.bf16.msra.mxu0 %v274
  %390 = vmatprep.subr.bf16.mxu0 0
  %391 = vmatpush2.bf16.msra.mxu0 %v289
  %392 = vmatprep.subr.bf16.mxu0 0
  %393 = vmatpush2.bf16.msra.mxu0 %v288
  %394 = vmatprep.subr.bf16.mxu0 0
  %395 = vmatpush2.bf16.msra.mxu0 %v287
  %396 = vmatprep.subr.bf16.mxu0 0
  %397 = vmatpush2.bf16.msra.mxu0 %v286
  %398 = vmatprep.subr.bf16.mxu0 0
  %399 = vmatpush2.bf16.msra.mxu0 %v285
  %400 = vmatprep.subr.bf16.mxu0 0
  %401 = vmatpush2.bf16.msra.mxu0 %v284
  %402 = vmatprep.subr.bf16.mxu0 0
  %403 = vmatpush2.bf16.msra.mxu0 %v283
  %404 = vmatprep.subr.bf16.mxu0 0
  %405 = vmatpush2.bf16.msra.mxu0 %v282
  %406 = vmatprep.mubr.bf16.mxu0 %v108
  %407 = vmatmul.mubr.bf16.gmra.mxu0 %v107
  %v408 = vpop.f32.mrf.mxu0
  %v409 = vadd.f32 %v369, %v408
  %v410 = vpop.f32.mrf.mxu0
  %v411 = vpop.f32.mrf.mxu0
  %v412 = vpop.f32.mrf.mxu0
  %413 = vdwg.mxu0
  %414 = vmatprep.subr.bf16.mxu0 0
  %415 = vmatpush1.bf16.msra.mxu0 0
  %416 = vmatprep.subr.bf16.mxu0 0
  %417 = vmatpush1.bf16.msra.mxu0 0
  %418 = vmatprep.subr.bf16.mxu0 0
  %419 = vmatpush1.bf16.msra.mxu0 0
  %420 = vmatprep.subr.bf16.mxu0 0
  %421 = vmatpush1.bf16.msra.mxu0 0
  %422 = vmatprep.subr.bf16.mxu0 0
  %423 = vmatpush1.bf16.msra.mxu0 %v293
  %424 = vmatprep.subr.bf16.mxu0 0
  %425 = vmatpush1.bf16.msra.mxu0 %v292
  %426 = vmatprep.subr.bf16.mxu0 0
  %427 = vmatpush1.bf16.msra.mxu0 %v291
  %428 = vmatprep.subr.bf16.mxu0 0
  %429 = vmatpush1.bf16.msra.mxu0 %v290
  %430 = vmatprep.subr.bf16.mxu0 0
  %431 = vmatpush2.bf16.msra.mxu0 0
  %432 = vmatprep.subr.bf16.mxu0 0
  %433 = vmatpush2.bf16.msra.mxu0 0
  %434 = vmatprep.subr.bf16.mxu0 0
  %435 = vmatpush2.bf16.msra.mxu0 0
  %436 = vmatprep.subr.bf16.mxu0 0
  %437 = vmatpush2.bf16.msra.mxu0 0
  %438 = vmatprep.subr.bf16.mxu0 0
  %439 = vmatpush2.bf16.msra.mxu0 0
  %440 = vmatprep.subr.bf16.mxu0 0
  %441 = vmatpush2.bf16.msra.mxu0 0
  %442 = vmatprep.subr.bf16.mxu0 0
  %443 = vmatpush2.bf16.msra.mxu0 0
  %444 = vmatprep.subr.bf16.mxu0 0
  %445 = vmatpush2.bf16.msra.mxu0 0
  %446 = vmatprep.mubr.bf16.mxu0 0
  %447 = vmatmul.mubr.bf16.gmra.mxu0 %v332
  %v448 = vpop.f32.mrf.mxu0
  %v449 = vadd.f32 %v409, %v448
  %v450 = vpop.f32.mrf.mxu0
  %v451 = vpop.f32.mrf.mxu0
  %v452 = vpop.f32.mrf.mxu0
  %453 = vdwg.mxu0
  %v454 = vmax.f32 %v449, 0.0
  %v455 = vpack.c.bf16 %v454, %v454
  %vm456 = vcmask 519168
  %457 = vst.msk [vmem:[%s3] sm:$0xf] %vm456, %v455
  // Predicated region
  $region14: #{cnn_backbone_forward.6} parent=0 // pred_check
    _
  $region15: #{cnn_backbone_forward.6} parent=0 // pred_check_branch
    %459 = sbr.rel (0) target = $region17
  $region16: #{cnn_backbone_forward.6} parent=0 // pred_region
    _
  $region17: #{cnn_backbone_forward.6} parent=0 // pred_fallthru
    _
  // Predicated region
  $region18: #{cnn_backbone_forward.6} parent=0 // pred_check
    _
  $region19: #{cnn_backbone_forward.6} parent=0 // pred_check_branch
    %461 = sbr.rel (0) target = $region21
  $region20: #{cnn_backbone_forward.6} parent=0 // pred_region
    _
  $region21: #{cnn_backbone_forward.6} parent=0 // pred_fallthru
    _

// kernel: cnn_backbone_forward.7
$region0: #{cnn_backbone_forward.7}
  #allocation0 [shape = 'u32[]', space=smem, size = 0x4, offset = 0x4, fixed_abs, tag = 'smem constant byte address 0x4 - core index']
  #allocation1 [shape = 'u32[144,128]{1,0:T(1,128)}', space=vmem, size = 0x12000, scoped, tag = 'internal scratch']
  %s0 = inlined_call_operand.vmem [shape: bf16[2,256], index: 0, kind: input, shape index: {}]
  %s1 = inlined_call_operand.vmem [shape: bf16[256,128], index: 1, kind: input, shape index: {}]
  %s2 = inlined_call_operand.vmem [shape: f32[1,128], index: 2, kind: input, shape index: {}]
  %s3 = inlined_call_operand.vmem [shape: bf16[128,6], index: 3, kind: input, shape index: {}]
  %s4 = inlined_call_operand.vmem [shape: f32[1,6], index: 4, kind: input, shape index: {}]
  %s5 = inlined_call_operand.hbm [shape: f32[2,6], index: 5, kind: output, shape index: {}]
  %s6 = sld [smem:[#allocation0]]
  $region30: #{cnn_backbone_forward.7} parent=0
    _
  %s8 = ssub.s32 1, %s6
  %s9 = scalar_select 0, %s8, %s6
  $region1: #{cnn_backbone_forward.7} parent=0
    #allocation2 [shape = 'u8[1024]{0}', space=vmem, size = 0x400, scoped, tag = 'output window, operand 0, single buffered']
    #allocation3 [shape = 's32[1]{0}', space=sflag, size = 0x4, scoped, tag = 'scoped memory for cnn_backbone_forward.7']
    %10 = vsyncpa [#allocation3], 0
    // Predicated region
    $region2: #{cnn_backbone_forward.7} parent=1 // pred_check
      _
    $region3: #{cnn_backbone_forward.7} parent=1 // pred_check_branch
      %12 = sbr.rel (0) target = $region5
    $region4: #{cnn_backbone_forward.7} parent=1 // pred_region
      _
    $region5: #{cnn_backbone_forward.7} parent=1 // pred_fallthru
      _
    // Predicated region
    $region6: #{cnn_backbone_forward.7} parent=1 // pred_check
      _
    $region7: #{cnn_backbone_forward.7} parent=1 // pred_check_branch
      %14 = sbr.rel (0) target = $region9
    $region8: #{cnn_backbone_forward.7} parent=1 // pred_region
      _
    $region9: #{cnn_backbone_forward.7} parent=1 // pred_fallthru
      _
    // Predicated region
    $region10: #{cnn_backbone_forward.7} parent=1 // pred_check
      _
    $region11: #{cnn_backbone_forward.7} parent=1 // pred_check_branch
      %16 = sbr.rel (0) target = $region13
    $region12: #{cnn_backbone_forward.7} parent=1 // pred_region
      _
    $region13: #{cnn_backbone_forward.7} parent=1 // pred_fallthru
      _
    // Predicated region
    $region14: #{cnn_backbone_forward.7} parent=1 // pred_check
      _
    $region15: #{cnn_backbone_forward.7} parent=1 // pred_check_branch
      %18 = sbr.rel (0) target = $region17
    $region16: #{cnn_backbone_forward.7} parent=1 // pred_region
      _
    $region17: #{cnn_backbone_forward.7} parent=1 // pred_fallthru
      _
    // Predicated region
    $region18: #{cnn_backbone_forward.7} parent=1 // pred_check
      _
    $region19: #{cnn_backbone_forward.7} parent=1 // pred_check_branch
      %20 = sbr.rel (0) target = $region21
    $region20: #{cnn_backbone_forward.7} parent=1 // pred_region
      _
    $region21: #{cnn_backbone_forward.7} parent=1 // pred_fallthru
      _
    %v22 = vld [vmem:[%s0] sm:$0x3]
    %v23 = vld [vmem:[%s1] sm:$0xf]
    %v24 = vld [vmem:[%s1 + $0x4] sm:$0xf]
    %v25 = vld [vmem:[%s1 + $0x8] sm:$0xf]
    %v26 = vld [vmem:[%s1 + $0xc] sm:$0xf]
    %v27 = vld [vmem:[%s1 + $0x10] sm:$0xf]
    %v28 = vld [vmem:[%s1 + $0x14] sm:$0xf]
    %v29 = vld [vmem:[%s1 + $0x18] sm:$0xf]
    %v30 = vld [vmem:[%s1 + $0x1c] sm:$0xf]
    %v31 = vld [vmem:[%s1 + $0x20] sm:$0xf]
    %v32 = vld [vmem:[%s1 + $0x24] sm:$0xf]
    %v33 = vld [vmem:[%s1 + $0x28] sm:$0xf]
    %v34 = vld [vmem:[%s1 + $0x2c] sm:$0xf]
    %v35 = vld [vmem:[%s1 + $0x30] sm:$0xf]
    %v36 = vld [vmem:[%s1 + $0x34] sm:$0xf]
    %v37 = vld [vmem:[%s1 + $0x38] sm:$0xf]
    %v38 = vld [vmem:[%s1 + $0x3c] sm:$0xf]
    %v39 = vld [vmem:[%s1 + $0x40] sm:$0xf]
    %v40 = vld [vmem:[%s1 + $0x44] sm:$0xf]
    %v41 = vld [vmem:[%s1 + $0x48] sm:$0xf]
    %v42 = vld [vmem:[%s1 + $0x4c] sm:$0xf]
    %v43 = vld [vmem:[%s1 + $0x50] sm:$0xf]
    %v44 = vld [vmem:[%s1 + $0x54] sm:$0xf]
    %v45 = vld [vmem:[%s1 + $0x58] sm:$0xf]
    %v46 = vld [vmem:[%s1 + $0x5c] sm:$0xf]
    %v47 = vld [vmem:[%s1 + $0x60] sm:$0xf]
    %v48 = vld [vmem:[%s1 + $0x64] sm:$0xf]
    %v49 = vld [vmem:[%s1 + $0x68] sm:$0xf]
    %v50 = vld [vmem:[%s1 + $0x6c] sm:$0xf]
    %v51 = vld [vmem:[%s1 + $0x70] sm:$0xf]
    %v52 = vld [vmem:[%s1 + $0x74] sm:$0xf]
    %v53 = vld [vmem:[%s1 + $0x78] sm:$0xf]
    %v54 = vld [vmem:[%s1 + $0x7c] sm:$0xf]
    %v55 = vld [vmem:[%s2] sm:$0x1]
    %v57 = vlaneseq
    %v58 = vshrl.u32 %v57, 7
    %v59 = vsub.s32 0, %v58
    %v60 = vrot.slane %v55, %v59
    %v64 = vunpack.c.l.s4 1966171168
    %v65 = vunpack.c.0.s8 %v64
    %v66 = vlaneseq
    %v67 = vshrl.u32 %v66, 7
    %v68 = vsub.s32 %v65, %v67
    %v69 = vrot.slane %v22, %v68
    %v70 = vcombine.high %v69, %v69
    %v72 = vunpack.c.l.s4 1966171168
    %v73 = vunpack.c.0.s8 %v72
    %v74 = vlaneseq
    %v75 = vshrl.u32 %v74, 7
    %v76 = vsub.s32 %v73, %v75
    %v77 = vrot.slane %v69, %v76
    %v79 = vunpack.c.l.s4 1966171168
    %v80 = vunpack.c.0.s8 %v79
    %v81 = vlaneseq
    %v82 = vshrl.u32 %v81, 7
    %v83 = vsub.s32 %v80, %v82
    %v84 = vrot.slane %v70, %v83
    %v119 = vunpack.c.l.b16 %v23
    %v120 = vunpack.c.l.b16 %v24
    %v121 = vunpack.c.l.b16 %v25
    %v122 = vunpack.c.l.b16 %v26
    %v123 = vunpack.c.l.b16 %v27
    %v124 = vunpack.c.l.b16 %v28
    %v125 = vunpack.c.l.b16 %v29
    %v126 = vunpack.c.l.b16 %v30
    %v127 = vunpack.c.l.b16 %v31
    %v128 = vunpack.c.l.b16 %v32
    %v129 = vunpack.c.l.b16 %v33
    %v130 = vunpack.c.l.b16 %v34
    %v131 = vunpack.c.l.b16 %v35
    %v132 = vunpack.c.l.b16 %v36
    %v133 = vunpack.c.l.b16 %v37
    %v134 = vunpack.c.l.b16 %v38
    %v135 = vunpack.c.l.b16 %v39
    %v136 = vunpack.c.l.b16 %v40
    %v137 = vunpack.c.l.b16 %v41
    %v138 = vunpack.c.l.b16 %v42
    %v139 = vunpack.c.l.b16 %v43
    %v140 = vunpack.c.l.b16 %v44
    %v141 = vunpack.c.l.b16 %v45
    %v142 = vunpack.c.l.b16 %v46
    %v143 = vunpack.c.l.b16 %v47
    %v144 = vunpack.c.l.b16 %v48
    %v145 = vunpack.c.l.b16 %v49
    %v146 = vunpack.c.l.b16 %v50
    %v147 = vunpack.c.l.b16 %v51
    %v148 = vunpack.c.l.b16 %v52
    %v149 = vunpack.c.l.b16 %v53
    %v150 = vunpack.c.l.b16 %v54
    %v151 = vpack.c.b16 %v120, %v119
    %v152 = vpack.c.b16 %v122, %v121
    %v153 = vpack.c.b16 %v124, %v123
    %v154 = vpack.c.b16 %v126, %v125
    %v155 = vpack.c.b16 %v128, %v127
    %v156 = vpack.c.b16 %v130, %v129
    %v157 = vpack.c.b16 %v132, %v131
    %v158 = vpack.c.b16 %v134, %v133
    %v159 = vpack.c.b16 %v136, %v135
    %v160 = vpack.c.b16 %v138, %v137
    %v161 = vpack.c.b16 %v140, %v139
    %v162 = vpack.c.b16 %v142, %v141
    %v163 = vpack.c.b16 %v144, %v143
    %v164 = vpack.c.b16 %v146, %v145
    %v165 = vpack.c.b16 %v148, %v147
    %v166 = vpack.c.b16 %v150, %v149
    %183 = vmatprep.subr.bf16.mxu0 0
    %184 = vmatpush1.bf16.msra.mxu0 %v158
    %185 = vmatprep.subr.bf16.mxu0 0
    %186 = vmatpush1.bf16.msra.mxu0 %v157
    %187 = vmatprep.subr.bf16.mxu0 0
    %188 = vmatpush1.bf16.msra.mxu0 %v156
    %189 = vmatprep.subr.bf16.mxu0 0
    %190 = vmatpush1.bf16.msra.mxu0 %v155
    %191 = vmatprep.subr.bf16.mxu0 0
    %192 = vmatpush1.bf16.msra.mxu0 %v154
    %193 = vmatprep.subr.bf16.mxu0 0
    %194 = vmatpush1.bf16.msra.mxu0 %v153
    %195 = vmatprep.subr.bf16.mxu0 0
    %196 = vmatpush1.bf16.msra.mxu0 %v152
    %197 = vmatprep.subr.bf16.mxu0 0
    %198 = vmatpush1.bf16.msra.mxu0 %v151
    %199 = vmatprep.subr.bf16.mxu0 0
    %200 = vmatpush2.bf16.msra.mxu0 %v166
    %201 = vmatprep.subr.bf16.mxu0 0
    %202 = vmatpush2.bf16.msra.mxu0 %v165
    %203 = vmatprep.subr.bf16.mxu0 0
    %204 = vmatpush2.bf16.msra.mxu0 %v164
    %205 = vmatprep.subr.bf16.mxu0 0
    %206 = vmatpush2.bf16.msra.mxu0 %v163
    %207 = vmatprep.subr.bf16.mxu0 0
    %208 = vmatpush2.bf16.msra.mxu0 %v162
    %209 = vmatprep.subr.bf16.mxu0 0
    %210 = vmatpush2.bf16.msra.mxu0 %v161
    %211 = vmatprep.subr.bf16.mxu0 0
    %212 = vmatpush2.bf16.msra.mxu0 %v160
    %213 = vmatprep.subr.bf16.mxu0 0
    %214 = vmatpush2.bf16.msra.mxu0 %v159
    %215 = vmatprep.mubr.bf16.mxu0 %v84
    %216 = vmatmul.mubr.bf16.gmra.mxu0 %v77
    %v217 = vpop.f32.mrf.mxu0
    %v218 = vadd.f32 %v60, %v217
    %v219 = vpop.f32.mrf.mxu0
    %v220 = vpop.f32.mrf.mxu0
    %v221 = vpop.f32.mrf.mxu0
    %222 = vdwg.mxu0
    %v223 = vmax.f32 %v218, 0.0
    %v224 = vpack.c.bf16 %v223, %v223
    %v225 = vld [vmem:[%s3] sm:$0xf]
    %v226 = vld [vmem:[%s3 + $0x4] sm:$0xf]
    %v227 = vld [vmem:[%s3 + $0x8] sm:$0xf]
    %v228 = vld [vmem:[%s3 + $0xc] sm:$0xf]
    %v229 = vld [vmem:[%s3 + $0x10] sm:$0xf]
    %v230 = vld [vmem:[%s3 + $0x14] sm:$0xf]
    %v231 = vld [vmem:[%s3 + $0x18] sm:$0xf]
    %v232 = vld [vmem:[%s3 + $0x1c] sm:$0xf]
    %v233 = vld [vmem:[%s3 + $0x20] sm:$0xf]
    %v234 = vld [vmem:[%s3 + $0x24] sm:$0xf]
    %v235 = vld [vmem:[%s3 + $0x28] sm:$0xf]
    %v236 = vld [vmem:[%s3 + $0x2c] sm:$0xf]
    %v237 = vld [vmem:[%s3 + $0x30] sm:$0xf]
    %v238 = vld [vmem:[%s3 + $0x34] sm:$0xf]
    %v239 = vld [vmem:[%s3 + $0x38] sm:$0xf]
    %v240 = vld [vmem:[%s3 + $0x3c] sm:$0xf]
    %v241 = vld [vmem:[%s4] sm:$0x1]
    %v243 = vlaneseq
    %v244 = vshrl.u32 %v243, 7
    %v245 = vsub.s32 0, %v244
    %v246 = vrot.slane %v241, %v245
    %v264 = vunpack.c.l.b16 %v225
    %v265 = vunpack.c.l.b16 %v226
    %v266 = vunpack.c.l.b16 %v227
    %v267 = vunpack.c.l.b16 %v228
    %v268 = vunpack.c.l.b16 %v229
    %v269 = vunpack.c.l.b16 %v230
    %v270 = vunpack.c.l.b16 %v231
    %v271 = vunpack.c.l.b16 %v232
    %v272 = vunpack.c.l.b16 %v233
    %v273 = vunpack.c.l.b16 %v234
    %v274 = vunpack.c.l.b16 %v235
    %v275 = vunpack.c.l.b16 %v236
    %v276 = vunpack.c.l.b16 %v237
    %v277 = vunpack.c.l.b16 %v238
    %v278 = vunpack.c.l.b16 %v239
    %v279 = vunpack.c.l.b16 %v240
    %v280 = vpack.c.b16 %v265, %v264
    %v281 = vpack.c.b16 %v267, %v266
    %v282 = vpack.c.b16 %v269, %v268
    %v283 = vpack.c.b16 %v271, %v270
    %v284 = vpack.c.b16 %v273, %v272
    %v285 = vpack.c.b16 %v275, %v274
    %v286 = vpack.c.b16 %v277, %v276
    %v287 = vpack.c.b16 %v279, %v278
    %296 = vmatprep.subr.bf16.mxu0 0
    %297 = vmatpush1.bf16.msra.mxu0 %v287
    %298 = vmatprep.subr.bf16.mxu0 0
    %299 = vmatpush1.bf16.msra.mxu0 %v286
    %300 = vmatprep.subr.bf16.mxu0 0
    %301 = vmatpush1.bf16.msra.mxu0 %v285
    %302 = vmatprep.subr.bf16.mxu0 0
    %303 = vmatpush1.bf16.msra.mxu0 %v284
    %304 = vmatprep.subr.bf16.mxu0 0
    %305 = vmatpush1.bf16.msra.mxu0 %v283
    %306 = vmatprep.subr.bf16.mxu0 0
    %307 = vmatpush1.bf16.msra.mxu0 %v282
    %308 = vmatprep.subr.bf16.mxu0 0
    %309 = vmatpush1.bf16.msra.mxu0 %v281
    %310 = vmatprep.subr.bf16.mxu0 0
    %311 = vmatpush1.bf16.msra.mxu0 %v280
    %312 = vmatprep.subr.bf16.mxu0 0
    %313 = vmatpush2.bf16.msra.mxu0 0
    %314 = vmatprep.subr.bf16.mxu0 0
    %315 = vmatpush2.bf16.msra.mxu0 0
    %316 = vmatprep.subr.bf16.mxu0 0
    %317 = vmatpush2.bf16.msra.mxu0 0
    %318 = vmatprep.subr.bf16.mxu0 0
    %319 = vmatpush2.bf16.msra.mxu0 0
    %320 = vmatprep.subr.bf16.mxu0 0
    %321 = vmatpush2.bf16.msra.mxu0 0
    %322 = vmatprep.subr.bf16.mxu0 0
    %323 = vmatpush2.bf16.msra.mxu0 0
    %324 = vmatprep.subr.bf16.mxu0 0
    %325 = vmatpush2.bf16.msra.mxu0 0
    %326 = vmatprep.subr.bf16.mxu0 0
    %327 = vmatpush2.bf16.msra.mxu0 0
    %328 = vmatprep.mubr.bf16.mxu0 0
    %329 = vmatmul.mubr.bf16.gmra.mxu0 %v224
    %v330 = vpop.f32.mrf.mxu0
    %v331 = vadd.f32 %v246, %v330
    %v332 = vpop.f32.mrf.mxu0
    %v333 = vpop.f32.mrf.mxu0
    %v334 = vpop.f32.mrf.mxu0
    %335 = vdwg.mxu0
    %vm336 = vcmask 41984
    %337 = vst.msk [vmem:[#allocation2] sm:$0x3] %vm336, %v331
    // Predicated region
    $region22: #{cnn_backbone_forward.7} parent=1 // pred_check
      _
    $region23: #{cnn_backbone_forward.7} parent=1 // pred_check_branch
      %339 = sbr.rel (0) target = $region25
    $region24: #{cnn_backbone_forward.7} parent=1 // pred_region
      %s341 = ssub.s32 32, 32
      %342 = vsyncadd [#allocation3], %s341
      %s344 = sshll.u32 [#allocation2], 4
      %s345 = int_to_ptr.vmem [resolvable:$true] %s344
      %347 = dma.vmem_to_hbm [thread:$0]  %s345, 32, %s5, [#allocation3]
    $region25: #{cnn_backbone_forward.7} parent=1 // pred_fallthru
      _
    // Predicated region
    $region26: #{cnn_backbone_forward.7} parent=1 // pred_check
      _
    $region27: #{cnn_backbone_forward.7} parent=1 // pred_check_branch
      %349 = sbr.rel (0) target = $region29
    $region28: #{cnn_backbone_forward.7} parent=1 // pred_region
      %350 = dma.done [#allocation3], 32
    $region29: #{cnn_backbone_forward.7} parent=1 // pred_fallthru
      _
    %351 = vsyncpa [#allocation3], 1

</llo_original>
